<compile_context>
chip_gen: v6e
topology: v6e:2x2x1
jax: 0.10.0
libtpu: 0.0.40
codegen_flags: <defaults>
</compile_context>

<pallas_src>
import functools

import jax
import jax.numpy as jnp
from jax import lax
from jax.experimental import pallas as pl
from jax.experimental.pallas import tpu as pltpu

_NEG_SLOPE = 0.01      # LeakyReLU slope used by the module
_LEFT_MARGIN = 8       # sublane-tile aligned zero margin left of stored activations


# ----------------------------------------------------------------------------
# fused kernel
# ----------------------------------------------------------------------------
def _fused_kernel(*refs, plan, bg, left, act_dtype):
    num_layers = len(plan)
    x0_ref = refs[0]
    w_refs = [refs[1 + 2 * l] for l in range(num_layers)]
    b_refs = [refs[2 + 2 * l] for l in range(num_layers)]
    o_ref = refs[1 + 2 * num_layers]
    act_refs = refs[2 + 2 * num_layers:]
    f32 = jnp.float32

    # ---- layer 0: one im2col matmul, batch folded on M ----
    p = plan[0]
    h = jnp.dot(x0_ref[...], w_refs[0][...], preferred_element_type=f32)
    h = h + b_refs[0][...]
    if p["act"]:
        h = jnp.where(h > 0, h, _NEG_SLOPE * h)

    # ---- layers 1 .. L-1: activations never leave VMEM ----
    for l in range(1, num_layers):
        p = plan[l]
        hin, win, cin = p["hin"], p["win"], p["cin"]
        hout, wout, cout = p["hout"], p["wout"], p["cout"]
        kh_n, kw_n, s, pad = p["KH"], p["KW"], p["s"], p["pad"]
        hp, wp = p["hp"], p["wp"]
        m = hout * wout
        a_ref = act_refs[l - 1]

        # zero only the padding margins; the interior is overwritten right below.
        if pad > 0:
            a_ref[:, 0:pad, :, :] = jnp.zeros((bg, pad, wp, cin), act_dtype)
            a_ref[:, pad + hin:hp, :, :] = jnp.zeros((bg, pad, wp, cin), act_dtype)
            a_ref[:, :, left - pad:left, :] = jnp.zeros((bg, hp, pad, cin), act_dtype)
            a_ref[:, :, left + win:wp, :] = jnp.zeros((bg, hp, pad, cin), act_dtype)

        # store this layer's input (sublane-aligned: column offset `left` = 8/16)
        a_ref[:, pad:pad + hin, left:left + win, :] = (
            h.reshape(bg, hin, win, cin).astype(act_dtype))

        # gather all KH*KW taps with strided loads and pack them on the K axis
        patches = []
        for kh in range(kh_n):
            for kw in range(kw_n):
                c0 = left - pad + kw
                if s == 1:
                    tap = a_ref[:, kh:kh + hout, c0:c0 + wout, :]
                else:
                    tap = a_ref[:, pl.ds(kh, hout, stride=s),
                                pl.ds(c0, wout, stride=s), :]
                patches.append(tap.reshape(bg * m, cin))
        cols = jnp.concatenate(patches, axis=-1)          # (bg*m, KH*KW*cin)
        kk = kh_n * kw_n * cin

        last = l == num_layers - 1
        if last and cout == 1:
            # final 1-channel conv on the VPU: broadcast multiply + one lane
            # reduction, producing the lane-dense (1, bg*m) output directly.
            w_row = w_refs[l][...].astype(f32)            # (1, KH*KW*cin)
            prod = cols.astype(f32) * w_row               # (bg*m, kk)
            out = jnp.sum(prod.reshape(1, bg * m, kk), axis=-1)   # (1, bg*m)
            if p["has_bias"]:
                out = out + b_refs[l][0, 0]
        else:
            # one K-packed MXU dot for the whole layer
            out = jnp.dot(cols, w_refs[l][...], preferred_element_type=f32)
            out = out + b_refs[l][...]
        if p["act"]:
            out = jnp.where(out > 0, out, _NEG_SLOPE * out)
        h = out

    o_ref[...] = h.astype(o_ref.dtype)


# ----------------------------------------------------------------------------
# wrapper
# ----------------------------------------------------------------------------
def _build_plan(params, height, width, left):
    plan = []
    h_sp, w_sp = height, width
    cin = int(params[0]["w"].shape[1])
    for p in params:
        cout, cin_w, kh_n, kw_n = (int(d) for d in p["w"].shape)
        assert cin_w == cin, (cin_w, cin)
        s, pad = int(p["stride"]), int(p["pad"])
        assert 0 <= pad <= left
        hout = (h_sp + 2 * pad - kh_n) // s + 1
        wout = (w_sp + 2 * pad - kw_n) // s + 1
        assert hout >= 1 and wout >= 1, "conv output collapsed to nothing"
        plan.append(dict(
            hin=h_sp, win=w_sp, cin=cin, cout=cout, KH=kh_n, KW=kw_n, s=s,
            pad=pad, hout=hout, wout=wout, act=bool(p["act"]),
            has_bias=p["b"] is not None,
            hp=h_sp + 2 * pad,                # padded rows held in scratch
            wp=left + w_sp + pad,             # left margin + cols + right pad
        ))
        h_sp, w_sp, cin = hout, wout, cout
    return plan


def discriminator_r_pallas(x_nchw, params, *, num_batch_blocks=1,
                           compute_dtype=jnp.float32):
    """Forward pass equivalent to DiscriminatorR.forward (returns out_real.squeeze()).

    num_batch_blocks=1 -> one grid step with the whole batch folded into M
    (best on v5e/v6e); set 2 on v7x to shard folded batch halves across its
    two TensorCores.  compute_dtype=jnp.bfloat16 halves im2col HBM traffic and
    scratch VMEM (dots still accumulate in f32)."""
    batch, _, height, width = (int(d) for d in x_nchw.shape)
    assert batch % num_batch_blocks == 0
    bg = batch // num_batch_blocks
    f32 = jnp.float32
    cd = compute_dtype
    left = _LEFT_MARGIN if cd == jnp.float32 else 2 * _LEFT_MARGIN
    plan = _build_plan(params, height, width, left)
    num_layers = len(plan)
    p0, pf = plan[0], plan[-1]
    m0 = p0["hout"] * p0["wout"]
    k0 = p0["KH"] * p0["KW"] * p0["cin"]
    mf, cf = pf["hout"] * pf["wout"], pf["cout"]

    # ---- hoisted preprocessing: layer-0 im2col, K packed as (kh, kw, cin),
    # batch folded onto the M (row) dimension ----
    xh = jnp.transpose(x_nchw, (0, 2, 3, 1)).astype(f32)           # NHWC
    xp = jnp.pad(xh, ((0, 0), (p0["pad"],) * 2, (p0["pad"],) * 2, (0, 0)))
    pieces = []
    for kh in range(p0["KH"]):
        for kw in range(p0["KW"]):
            piece = xp[:, kh::p0["s"], kw::p0["s"], :]
            piece = piece[:, :p0["hout"], :p0["wout"], :]
            pieces.append(piece.reshape(batch, m0, p0["cin"]))
    x0cols = (jnp.concatenate(pieces, axis=-1)
              .reshape(batch * m0, k0).astype(cd))                 # (B*M0, K0)

    inputs = [x0cols]
    in_specs = [pl.BlockSpec((bg * m0, k0), lambda i: (i, 0))]

    for l, (p, pe) in enumerate(zip(params, plan)):
        kh_n, kw_n, cin, cout = pe["KH"], pe["KW"], pe["cin"], pe["cout"]
        kk = kh_n * kw_n * cin
        last = l == num_layers - 1
        if last and cout == 1:
            w = jnp.transpose(p["w"], (2, 3, 1, 0)).reshape(1, kk)  # (1, K)
            in_specs.append(pl.BlockSpec((1, kk), lambda i: (0, 0)))
        else:
            w = jnp.transpose(p["w"], (2, 3, 1, 0)).reshape(kk, cout)  # (K, Cout)
            in_specs.append(pl.BlockSpec((kk, cout), lambda i: (0, 0)))
        inputs.append(w.astype(cd))

        b = p["b"] if p["b"] is not None else jnp.zeros((cout,), f32)
        inputs.append(b.reshape(1, cout).astype(f32))
        in_specs.append(pl.BlockSpec((1, cout), lambda i: (0, 0)))

    # per-layer padded-activation scratch (leading folded-batch dim)
    scratch_shapes = [pltpu.VMEM((bg, pe["hp"], pe["wp"], pe["cin"]), cd)
                      for pe in plan[1:]]
    # TODO(synk): at large H*W / conv_dim, move these buffers into sequential
    # pl.run_scoped scopes (peak VMEM = max(layer) not sum(layers)) and set
    # vmem_limit_bytes explicitly — matters on v7x's 64 MiB VMEM.

    if cf == 1:
        out_shape = jax.ShapeDtypeStruct((num_batch_blocks, 1, bg * mf), f32)
        out_specs = pl.BlockSpec((None, 1, bg * mf), lambda i: (i, 0, 0))
    else:
        out_shape = jax.ShapeDtypeStruct((batch * mf, cf), f32)
        out_specs = pl.BlockSpec((bg * mf, cf), lambda i: (i, 0))

    out = pl.pallas_call(
        functools.partial(_fused_kernel, plan=plan, bg=bg, left=left,
                          act_dtype=cd),
        out_shape=out_shape,
        grid=(num_batch_blocks,),
        in_specs=in_specs,
        out_specs=out_specs,
        scratch_shapes=scratch_shapes,
        compiler_params=pltpu.CompilerParams(
            dimension_semantics=("parallel",)),
    )(*inputs)

    if cf == 1:
        out3 = out.reshape(batch, pf["hout"], pf["wout"])          # pure reshape
    else:
        out3 = jnp.transpose(out.reshape(batch, pf["hout"], pf["wout"], cf),
                             (0, 3, 1, 2))
    # matches torch .squeeze(): also drops the batch axis when batch == 1
    return jnp.squeeze(out3)


# ----------------------------------------------------------------------------
# parameters + pure-JAX reference
# ----------------------------------------------------------------------------
def make_discriminator_params(key, conv_dim=4, repeat_num=3, dtype=jnp.float32):
    """Deterministic synthetic parameters matching DiscriminatorR.__init__ shapes.
    Weights stored PyTorch-style OIHW (Cout, Cin, KH, KW)."""
    params = []
    curr_dim = conv_dim
    key, kw, kb = jax.random.split(key, 3)
    params.append(dict(
        w=0.1 * jax.random.normal(kw, (conv_dim, 3, 4, 4), dtype),
        b=0.05 * jax.random.normal(kb, (conv_dim,), dtype),
        stride=2, pad=1, act=True))
    for _ in range(1, repeat_num):
        key, kw, kb = jax.random.split(key, 3)
        params.append(dict(
            w=0.1 * jax.random.normal(kw, (curr_dim * 2, curr_dim, 4, 4), dtype),
            b=0.05 * jax.random.normal(kb, (curr_dim * 2,), dtype),
            stride=2, pad=1, act=True))
        curr_dim *= 2
    key, kw = jax.random.split(key)
    params.append(dict(
        w=0.1 * jax.random.normal(kw, (1, curr_dim, 3, 3), dtype),
        b=None,                       # final conv has bias=False
        stride=1, pad=1, act=False))
    return params


def discriminator_r_reference(x_nchw, params):
    """Pure-JAX reference (lax.conv) for correctness checking."""
    h = x_nchw
    for p in params:
        h = lax.conv_general_dilated(
            h, p["w"], window_strides=(p["stride"], p["stride"]),
            padding=[(p["pad"], p["pad"]), (p["pad"], p["pad"])],
            dimension_numbers=("NCHW", "OIHW", "NCHW"))
        if p["b"] is not None:
            h = h + p["b"].reshape(1, -1, 1, 1)
        if p["act"]:
            h = jnp.where(h > 0, h, _NEG_SLOPE * h)
    return jnp.squeeze(h)


if __name__ == "__main__":
    key = jax.random.PRNGKey(0)
    kx, kp = jax.random.split(key)

    # batch=2, in_channels=3 (fixed by the module), 16x16 spatial,
    # conv_dim=4, repeat_num=3  ->  output shape (2, 2, 2) after squeeze.
    x = jax.random.normal(kx, (2, 3, 16, 16), jnp.float32)
    params = make_discriminator_params(kp, conv_dim=4, repeat_num=3)

    fwd = jax.jit(lambda inp: discriminator_r_pallas(inp, params))
    out = jax.block_until_ready(fwd(x))

    ref = discriminator_r_reference(x, params)
    assert out.shape == ref.shape, (out.shape, ref.shape)
    assert jnp.allclose(out, ref, atol=1e-4, rtol=1e-4), \
        float(jnp.max(jnp.abs(out - ref)))

    print("KERNEL_OK")
</pallas_src>

<mosaic_0001>
module attributes {stable_mosaic.version = 11 : i64} {
  func.func @_fused_kernel(%arg0: i32, %arg1: memref<128x48xf32, #tpu.memory_space<vmem>>, %arg2: memref<48x4xf32, #tpu.memory_space<vmem>>, %arg3: memref<1x4xf32, #tpu.memory_space<vmem>>, %arg4: memref<64x8xf32, #tpu.memory_space<vmem>>, %arg5: memref<1x8xf32, #tpu.memory_space<vmem>>, %arg6: memref<128x16xf32, #tpu.memory_space<vmem>>, %arg7: memref<1x16xf32, #tpu.memory_space<vmem>>, %arg8: memref<1x144xf32, #tpu.memory_space<vmem>>, %arg9: memref<1x1xf32, #tpu.memory_space<vmem>>, %arg10: memref<1x1x8xf32, #tpu.memory_space<vmem>>, %arg11: memref<2x10x17x4xf32, #tpu.memory_space<vmem>>, %arg12: memref<2x6x13x8xf32, #tpu.memory_space<vmem>>, %arg13: memref<2x4x11x16xf32, #tpu.memory_space<vmem>>) attributes {dimension_semantics = [#tpu.dimension_semantics<parallel>], iteration_bounds = array<i64: 1>, scalar_prefetch = 0 : i64, scratch_operands = 3 : i64, tpu.core_type = #tpu.core_type<tc>, window_params = [{transform_indices = @transform_0, window_bounds = array<i64: 128, 48>}, {pipeline_mode = #tpu.pipeline_mode<synchronous>, transform_indices = @transform_1, window_bounds = array<i64: 48, 4>}, {pipeline_mode = #tpu.pipeline_mode<synchronous>, transform_indices = @transform_2, window_bounds = array<i64: 1, 4>}, {pipeline_mode = #tpu.pipeline_mode<synchronous>, transform_indices = @transform_3, window_bounds = array<i64: 64, 8>}, {pipeline_mode = #tpu.pipeline_mode<synchronous>, transform_indices = @transform_4, window_bounds = array<i64: 1, 8>}, {pipeline_mode = #tpu.pipeline_mode<synchronous>, transform_indices = @transform_5, window_bounds = array<i64: 128, 16>}, {pipeline_mode = #tpu.pipeline_mode<synchronous>, transform_indices = @transform_6, window_bounds = array<i64: 1, 16>}, {pipeline_mode = #tpu.pipeline_mode<synchronous>, transform_indices = @transform_7, window_bounds = array<i64: 1, 144>}, {pipeline_mode = #tpu.pipeline_mode<synchronous>, transform_indices = @transform_8, window_bounds = array<i64: 1, 1>}, {transform_indices = @transform_9, window_bounds = array<i64: 1, 1, 8>}]} {
    %c0 = arith.constant 0 : index
    %c0_0 = arith.constant 0 : index
    %0 = vector.load %arg1[%c0, %c0_0] : memref<128x48xf32, #tpu.memory_space<vmem>>, vector<128x48xf32>
    %c0_1 = arith.constant 0 : index
    %c0_2 = arith.constant 0 : index
    %1 = vector.load %arg2[%c0_1, %c0_2] : memref<48x4xf32, #tpu.memory_space<vmem>>, vector<48x4xf32>
    %cst = arith.constant dense<0.000000e+00> : vector<128x4xf32>
    %2 = tpu.matmul %0, %1, %cst {dimension_numbers = #tpu.dot_dimension_numbers<[1], [0], [0], [1], [0, 0, 1, 1], [], []>} : vector<128x48xf32>, vector<48x4xf32>, vector<128x4xf32> -> vector<128x4xf32>
    %c0_3 = arith.constant 0 : index
    %c0_4 = arith.constant 0 : index
    %3 = vector.load %arg3[%c0_3, %c0_4] : memref<1x4xf32, #tpu.memory_space<vmem>>, vector<1x4xf32>
    %4 = vector.broadcast %3 : vector<1x4xf32> to vector<128x4xf32>
    %5 = arith.addf %2, %4 : vector<128x4xf32>
    %cst_5 = arith.constant 0.000000e+00 : f32
    %6 = vector.broadcast %cst_5 : f32 to vector<128x4xf32>
    %7 = arith.cmpf ogt, %5, %6 : vector<128x4xf32>
    %cst_6 = arith.constant 0.00999999977 : f32
    %8 = vector.broadcast %cst_6 : f32 to vector<128x4xf32>
    %9 = arith.mulf %8, %5 : vector<128x4xf32>
    %10 = arith.select %7, %5, %9 : vector<128x4xi1>, vector<128x4xf32>
    %cst_7 = arith.constant 0.000000e+00 : f32
    %11 = vector.broadcast %cst_7 : f32 to vector<2x1x17x4xf32>
    %c0_8 = arith.constant 0 : index
    %c0_9 = arith.constant 0 : index
    %c0_10 = arith.constant 0 : index
    %c0_11 = arith.constant 0 : index
    %12 = vector.load %arg11[%c0_8, %c0_9, %c0_10, %c0_11] : memref<2x10x17x4xf32, #tpu.memory_space<vmem>>, vector<2x1x17x4xf32>
    tpu.vector_store %arg11[%c0_8, %c0_9, %c0_10, %c0_11], %11 {strides = array<i32>} : memref<2x10x17x4xf32, #tpu.memory_space<vmem>>, vector<2x1x17x4xf32>,
    %cst_12 = arith.constant 0.000000e+00 : f32
    %13 = vector.broadcast %cst_12 : f32 to vector<2x1x17x4xf32>
    %c0_13 = arith.constant 0 : index
    %c9 = arith.constant 9 : index
    %c0_14 = arith.constant 0 : index
    %c0_15 = arith.constant 0 : index
    %14 = vector.load %arg11[%c0_13, %c9, %c0_14, %c0_15] : memref<2x10x17x4xf32, #tpu.memory_space<vmem>>, vector<2x1x17x4xf32>
    tpu.vector_store %arg11[%c0_13, %c9, %c0_14, %c0_15], %13 {strides = array<i32>} : memref<2x10x17x4xf32, #tpu.memory_space<vmem>>, vector<2x1x17x4xf32>,
    %cst_16 = arith.constant 0.000000e+00 : f32
    %15 = vector.broadcast %cst_16 : f32 to vector<2x10x1x4xf32>
    %c0_17 = arith.constant 0 : index
    %c0_18 = arith.constant 0 : index
    %c7 = arith.constant 7 : index
    %c0_19 = arith.constant 0 : index
    %16 = vector.load %arg11[%c0_17, %c0_18, %c7, %c0_19] : memref<2x10x17x4xf32, #tpu.memory_space<vmem>>, vector<2x10x1x4xf32>
    tpu.vector_store %arg11[%c0_17, %c0_18, %c7, %c0_19], %15 {strides = array<i32>} : memref<2x10x17x4xf32, #tpu.memory_space<vmem>>, vector<2x10x1x4xf32>,
    %cst_20 = arith.constant 0.000000e+00 : f32
    %17 = vector.broadcast %cst_20 : f32 to vector<2x10x1x4xf32>
    %c0_21 = arith.constant 0 : index
    %c0_22 = arith.constant 0 : index
    %c16 = arith.constant 16 : index
    %c0_23 = arith.constant 0 : index
    %18 = vector.load %arg11[%c0_21, %c0_22, %c16, %c0_23] : memref<2x10x17x4xf32, #tpu.memory_space<vmem>>, vector<2x10x1x4xf32>
    tpu.vector_store %arg11[%c0_21, %c0_22, %c16, %c0_23], %17 {strides = array<i32>} : memref<2x10x17x4xf32, #tpu.memory_space<vmem>>, vector<2x10x1x4xf32>,
    %19 = vector.shape_cast %10 : vector<128x4xf32> to vector<2x8x8x4xf32>
    %c0_24 = arith.constant 0 : index
    %c1 = arith.constant 1 : index
    %c8 = arith.constant 8 : index
    %c0_25 = arith.constant 0 : index
    %20 = vector.load %arg11[%c0_24, %c1, %c8, %c0_25] : memref<2x10x17x4xf32, #tpu.memory_space<vmem>>, vector<2x8x8x4xf32>
    tpu.vector_store %arg11[%c0_24, %c1, %c8, %c0_25], %19 {strides = array<i32>} : memref<2x10x17x4xf32, #tpu.memory_space<vmem>>, vector<2x8x8x4xf32>,
    %c0_26 = arith.constant 0 : index
    %c0_27 = arith.constant 0 : index
    %c7_28 = arith.constant 7 : index
    %c0_29 = arith.constant 0 : index
    %21 = tpu.strided_load %arg11[%c0_26, %c0_27, %c7_28, %c0_29] {strides = array<i32: 1, 2, 2, 1>} : memref<2x10x17x4xf32, #tpu.memory_space<vmem>>, vector<2x4x4x4xf32>
    %22 = vector.shape_cast %21 : vector<2x4x4x4xf32> to vector<32x4xf32>
    %c0_30 = arith.constant 0 : index
    %c0_31 = arith.constant 0 : index
    %c8_32 = arith.constant 8 : index
    %c0_33 = arith.constant 0 : index
    %23 = tpu.strided_load %arg11[%c0_30, %c0_31, %c8_32, %c0_33] {strides = array<i32: 1, 2, 2, 1>} : memref<2x10x17x4xf32, #tpu.memory_space<vmem>>, vector<2x4x4x4xf32>
    %24 = vector.shape_cast %23 : vector<2x4x4x4xf32> to vector<32x4xf32>
    %c0_34 = arith.constant 0 : index
    %c0_35 = arith.constant 0 : index
    %c9_36 = arith.constant 9 : index
    %c0_37 = arith.constant 0 : index
    %25 = tpu.strided_load %arg11[%c0_34, %c0_35, %c9_36, %c0_37] {strides = array<i32: 1, 2, 2, 1>} : memref<2x10x17x4xf32, #tpu.memory_space<vmem>>, vector<2x4x4x4xf32>
    %26 = vector.shape_cast %25 : vector<2x4x4x4xf32> to vector<32x4xf32>
    %c0_38 = arith.constant 0 : index
    %c0_39 = arith.constant 0 : index
    %c10 = arith.constant 10 : index
    %c0_40 = arith.constant 0 : index
    %27 = tpu.strided_load %arg11[%c0_38, %c0_39, %c10, %c0_40] {strides = array<i32: 1, 2, 2, 1>} : memref<2x10x17x4xf32, #tpu.memory_space<vmem>>, vector<2x4x4x4xf32>
    %28 = vector.shape_cast %27 : vector<2x4x4x4xf32> to vector<32x4xf32>
    %c0_41 = arith.constant 0 : index
    %c1_42 = arith.constant 1 : index
    %c7_43 = arith.constant 7 : index
    %c0_44 = arith.constant 0 : index
    %29 = tpu.strided_load %arg11[%c0_41, %c1_42, %c7_43, %c0_44] {strides = array<i32: 1, 2, 2, 1>} : memref<2x10x17x4xf32, #tpu.memory_space<vmem>>, vector<2x4x4x4xf32>
    %30 = vector.shape_cast %29 : vector<2x4x4x4xf32> to vector<32x4xf32>
    %c0_45 = arith.constant 0 : index
    %c1_46 = arith.constant 1 : index
    %c8_47 = arith.constant 8 : index
    %c0_48 = arith.constant 0 : index
    %31 = tpu.strided_load %arg11[%c0_45, %c1_46, %c8_47, %c0_48] {strides = array<i32: 1, 2, 2, 1>} : memref<2x10x17x4xf32, #tpu.memory_space<vmem>>, vector<2x4x4x4xf32>
    %32 = vector.shape_cast %31 : vector<2x4x4x4xf32> to vector<32x4xf32>
    %c0_49 = arith.constant 0 : index
    %c1_50 = arith.constant 1 : index
    %c9_51 = arith.constant 9 : index
    %c0_52 = arith.constant 0 : index
    %33 = tpu.strided_load %arg11[%c0_49, %c1_50, %c9_51, %c0_52] {strides = array<i32: 1, 2, 2, 1>} : memref<2x10x17x4xf32, #tpu.memory_space<vmem>>, vector<2x4x4x4xf32>
    %34 = vector.shape_cast %33 : vector<2x4x4x4xf32> to vector<32x4xf32>
    %c0_53 = arith.constant 0 : index
    %c1_54 = arith.constant 1 : index
    %c10_55 = arith.constant 10 : index
    %c0_56 = arith.constant 0 : index
    %35 = tpu.strided_load %arg11[%c0_53, %c1_54, %c10_55, %c0_56] {strides = array<i32: 1, 2, 2, 1>} : memref<2x10x17x4xf32, #tpu.memory_space<vmem>>, vector<2x4x4x4xf32>
    %36 = vector.shape_cast %35 : vector<2x4x4x4xf32> to vector<32x4xf32>
    %c0_57 = arith.constant 0 : index
    %c2 = arith.constant 2 : index
    %c7_58 = arith.constant 7 : index
    %c0_59 = arith.constant 0 : index
    %37 = tpu.strided_load %arg11[%c0_57, %c2, %c7_58, %c0_59] {strides = array<i32: 1, 2, 2, 1>} : memref<2x10x17x4xf32, #tpu.memory_space<vmem>>, vector<2x4x4x4xf32>
    %38 = vector.shape_cast %37 : vector<2x4x4x4xf32> to vector<32x4xf32>
    %c0_60 = arith.constant 0 : index
    %c2_61 = arith.constant 2 : index
    %c8_62 = arith.constant 8 : index
    %c0_63 = arith.constant 0 : index
    %39 = tpu.strided_load %arg11[%c0_60, %c2_61, %c8_62, %c0_63] {strides = array<i32: 1, 2, 2, 1>} : memref<2x10x17x4xf32, #tpu.memory_space<vmem>>, vector<2x4x4x4xf32>
    %40 = vector.shape_cast %39 : vector<2x4x4x4xf32> to vector<32x4xf32>
    %c0_64 = arith.constant 0 : index
    %c2_65 = arith.constant 2 : index
    %c9_66 = arith.constant 9 : index
    %c0_67 = arith.constant 0 : index
    %41 = tpu.strided_load %arg11[%c0_64, %c2_65, %c9_66, %c0_67] {strides = array<i32: 1, 2, 2, 1>} : memref<2x10x17x4xf32, #tpu.memory_space<vmem>>, vector<2x4x4x4xf32>
    %42 = vector.shape_cast %41 : vector<2x4x4x4xf32> to vector<32x4xf32>
    %c0_68 = arith.constant 0 : index
    %c2_69 = arith.constant 2 : index
    %c10_70 = arith.constant 10 : index
    %c0_71 = arith.constant 0 : index
    %43 = tpu.strided_load %arg11[%c0_68, %c2_69, %c10_70, %c0_71] {strides = array<i32: 1, 2, 2, 1>} : memref<2x10x17x4xf32, #tpu.memory_space<vmem>>, vector<2x4x4x4xf32>
    %44 = vector.shape_cast %43 : vector<2x4x4x4xf32> to vector<32x4xf32>
    %c0_72 = arith.constant 0 : index
    %c3 = arith.constant 3 : index
    %c7_73 = arith.constant 7 : index
    %c0_74 = arith.constant 0 : index
    %45 = tpu.strided_load %arg11[%c0_72, %c3, %c7_73, %c0_74] {strides = array<i32: 1, 2, 2, 1>} : memref<2x10x17x4xf32, #tpu.memory_space<vmem>>, vector<2x4x4x4xf32>
    %46 = vector.shape_cast %45 : vector<2x4x4x4xf32> to vector<32x4xf32>
    %c0_75 = arith.constant 0 : index
    %c3_76 = arith.constant 3 : index
    %c8_77 = arith.constant 8 : index
    %c0_78 = arith.constant 0 : index
    %47 = tpu.strided_load %arg11[%c0_75, %c3_76, %c8_77, %c0_78] {strides = array<i32: 1, 2, 2, 1>} : memref<2x10x17x4xf32, #tpu.memory_space<vmem>>, vector<2x4x4x4xf32>
    %48 = vector.shape_cast %47 : vector<2x4x4x4xf32> to vector<32x4xf32>
    %c0_79 = arith.constant 0 : index
    %c3_80 = arith.constant 3 : index
    %c9_81 = arith.constant 9 : index
    %c0_82 = arith.constant 0 : index
    %49 = tpu.strided_load %arg11[%c0_79, %c3_80, %c9_81, %c0_82] {strides = array<i32: 1, 2, 2, 1>} : memref<2x10x17x4xf32, #tpu.memory_space<vmem>>, vector<2x4x4x4xf32>
    %50 = vector.shape_cast %49 : vector<2x4x4x4xf32> to vector<32x4xf32>
    %c0_83 = arith.constant 0 : index
    %c3_84 = arith.constant 3 : index
    %c10_85 = arith.constant 10 : index
    %c0_86 = arith.constant 0 : index
    %51 = tpu.strided_load %arg11[%c0_83, %c3_84, %c10_85, %c0_86] {strides = array<i32: 1, 2, 2, 1>} : memref<2x10x17x4xf32, #tpu.memory_space<vmem>>, vector<2x4x4x4xf32>
    %52 = vector.shape_cast %51 : vector<2x4x4x4xf32> to vector<32x4xf32>
    %53 = tpu.concatenate %22, %24, %26, %28, %30, %32, %34, %36, %38, %40, %42, %44, %46, %48, %50, %52 in 1 : vector<32x4xf32>, vector<32x4xf32>, vector<32x4xf32>, vector<32x4xf32>, vector<32x4xf32>, vector<32x4xf32>, vector<32x4xf32>, vector<32x4xf32>, vector<32x4xf32>, vector<32x4xf32>, vector<32x4xf32>, vector<32x4xf32>, vector<32x4xf32>, vector<32x4xf32>, vector<32x4xf32>, vector<32x4xf32> -> vector<32x64xf32>
    %c0_87 = arith.constant 0 : index
    %c0_88 = arith.constant 0 : index
    %54 = vector.load %arg4[%c0_87, %c0_88] : memref<64x8xf32, #tpu.memory_space<vmem>>, vector<64x8xf32>
    %cst_89 = arith.constant dense<0.000000e+00> : vector<32x8xf32>
    %55 = tpu.matmul %53, %54, %cst_89 {dimension_numbers = #tpu.dot_dimension_numbers<[1], [0], [0], [1], [0, 0, 1, 1], [], []>} : vector<32x64xf32>, vector<64x8xf32>, vector<32x8xf32> -> vector<32x8xf32>
    %c0_90 = arith.constant 0 : index
    %c0_91 = arith.constant 0 : index
    %56 = vector.load %arg5[%c0_90, %c0_91] : memref<1x8xf32, #tpu.memory_space<vmem>>, vector<1x8xf32>
    %57 = vector.broadcast %56 : vector<1x8xf32> to vector<32x8xf32>
    %58 = arith.addf %55, %57 : vector<32x8xf32>
    %cst_92 = arith.constant 0.000000e+00 : f32
    %59 = vector.broadcast %cst_92 : f32 to vector<32x8xf32>
    %60 = arith.cmpf ogt, %58, %59 : vector<32x8xf32>
    %cst_93 = arith.constant 0.00999999977 : f32
    %61 = vector.broadcast %cst_93 : f32 to vector<32x8xf32>
    %62 = arith.mulf %61, %58 : vector<32x8xf32>
    %63 = arith.select %60, %58, %62 : vector<32x8xi1>, vector<32x8xf32>
    %cst_94 = arith.constant 0.000000e+00 : f32
    %64 = vector.broadcast %cst_94 : f32 to vector<2x1x13x8xf32>
    %c0_95 = arith.constant 0 : index
    %c0_96 = arith.constant 0 : index
    %c0_97 = arith.constant 0 : index
    %c0_98 = arith.constant 0 : index
    %65 = vector.load %arg12[%c0_95, %c0_96, %c0_97, %c0_98] : memref<2x6x13x8xf32, #tpu.memory_space<vmem>>, vector<2x1x13x8xf32>
    tpu.vector_store %arg12[%c0_95, %c0_96, %c0_97, %c0_98], %64 {strides = array<i32>} : memref<2x6x13x8xf32, #tpu.memory_space<vmem>>, vector<2x1x13x8xf32>,
    %cst_99 = arith.constant 0.000000e+00 : f32
    %66 = vector.broadcast %cst_99 : f32 to vector<2x1x13x8xf32>
    %c0_100 = arith.constant 0 : index
    %c5 = arith.constant 5 : index
    %c0_101 = arith.constant 0 : index
    %c0_102 = arith.constant 0 : index
    %67 = vector.load %arg12[%c0_100, %c5, %c0_101, %c0_102] : memref<2x6x13x8xf32, #tpu.memory_space<vmem>>, vector<2x1x13x8xf32>
    tpu.vector_store %arg12[%c0_100, %c5, %c0_101, %c0_102], %66 {strides = array<i32>} : memref<2x6x13x8xf32, #tpu.memory_space<vmem>>, vector<2x1x13x8xf32>,
    %cst_103 = arith.constant 0.000000e+00 : f32
    %68 = vector.broadcast %cst_103 : f32 to vector<2x6x1x8xf32>
    %c0_104 = arith.constant 0 : index
    %c0_105 = arith.constant 0 : index
    %c7_106 = arith.constant 7 : index
    %c0_107 = arith.constant 0 : index
    %69 = vector.load %arg12[%c0_104, %c0_105, %c7_106, %c0_107] : memref<2x6x13x8xf32, #tpu.memory_space<vmem>>, vector<2x6x1x8xf32>
    tpu.vector_store %arg12[%c0_104, %c0_105, %c7_106, %c0_107], %68 {strides = array<i32>} : memref<2x6x13x8xf32, #tpu.memory_space<vmem>>, vector<2x6x1x8xf32>,
    %cst_108 = arith.constant 0.000000e+00 : f32
    %70 = vector.broadcast %cst_108 : f32 to vector<2x6x1x8xf32>
    %c0_109 = arith.constant 0 : index
    %c0_110 = arith.constant 0 : index
    %c12 = arith.constant 12 : index
    %c0_111 = arith.constant 0 : index
    %71 = vector.load %arg12[%c0_109, %c0_110, %c12, %c0_111] : memref<2x6x13x8xf32, #tpu.memory_space<vmem>>, vector<2x6x1x8xf32>
    tpu.vector_store %arg12[%c0_109, %c0_110, %c12, %c0_111], %70 {strides = array<i32>} : memref<2x6x13x8xf32, #tpu.memory_space<vmem>>, vector<2x6x1x8xf32>,
    %72 = vector.shape_cast %63 : vector<32x8xf32> to vector<2x4x4x8xf32>
    %c0_112 = arith.constant 0 : index
    %c1_113 = arith.constant 1 : index
    %c8_114 = arith.constant 8 : index
    %c0_115 = arith.constant 0 : index
    %73 = vector.load %arg12[%c0_112, %c1_113, %c8_114, %c0_115] : memref<2x6x13x8xf32, #tpu.memory_space<vmem>>, vector<2x4x4x8xf32>
    tpu.vector_store %arg12[%c0_112, %c1_113, %c8_114, %c0_115], %72 {strides = array<i32>} : memref<2x6x13x8xf32, #tpu.memory_space<vmem>>, vector<2x4x4x8xf32>,
    %c0_116 = arith.constant 0 : index
    %c0_117 = arith.constant 0 : index
    %c7_118 = arith.constant 7 : index
    %c0_119 = arith.constant 0 : index
    %74 = tpu.strided_load %arg12[%c0_116, %c0_117, %c7_118, %c0_119] {strides = array<i32: 1, 2, 2, 1>} : memref<2x6x13x8xf32, #tpu.memory_space<vmem>>, vector<2x2x2x8xf32>
    %75 = vector.shape_cast %74 : vector<2x2x2x8xf32> to vector<8x8xf32>
    %c0_120 = arith.constant 0 : index
    %c0_121 = arith.constant 0 : index
    %c8_122 = arith.constant 8 : index
    %c0_123 = arith.constant 0 : index
    %76 = tpu.strided_load %arg12[%c0_120, %c0_121, %c8_122, %c0_123] {strides = array<i32: 1, 2, 2, 1>} : memref<2x6x13x8xf32, #tpu.memory_space<vmem>>, vector<2x2x2x8xf32>
    %77 = vector.shape_cast %76 : vector<2x2x2x8xf32> to vector<8x8xf32>
    %c0_124 = arith.constant 0 : index
    %c0_125 = arith.constant 0 : index
    %c9_126 = arith.constant 9 : index
    %c0_127 = arith.constant 0 : index
    %78 = tpu.strided_load %arg12[%c0_124, %c0_125, %c9_126, %c0_127] {strides = array<i32: 1, 2, 2, 1>} : memref<2x6x13x8xf32, #tpu.memory_space<vmem>>, vector<2x2x2x8xf32>
    %79 = vector.shape_cast %78 : vector<2x2x2x8xf32> to vector<8x8xf32>
    %c0_128 = arith.constant 0 : index
    %c0_129 = arith.constant 0 : index
    %c10_130 = arith.constant 10 : index
    %c0_131 = arith.constant 0 : index
    %80 = tpu.strided_load %arg12[%c0_128, %c0_129, %c10_130, %c0_131] {strides = array<i32: 1, 2, 2, 1>} : memref<2x6x13x8xf32, #tpu.memory_space<vmem>>, vector<2x2x2x8xf32>
    %81 = vector.shape_cast %80 : vector<2x2x2x8xf32> to vector<8x8xf32>
    %c0_132 = arith.constant 0 : index
    %c1_133 = arith.constant 1 : index
    %c7_134 = arith.constant 7 : index
    %c0_135 = arith.constant 0 : index
    %82 = tpu.strided_load %arg12[%c0_132, %c1_133, %c7_134, %c0_135] {strides = array<i32: 1, 2, 2, 1>} : memref<2x6x13x8xf32, #tpu.memory_space<vmem>>, vector<2x2x2x8xf32>
    %83 = vector.shape_cast %82 : vector<2x2x2x8xf32> to vector<8x8xf32>
    %c0_136 = arith.constant 0 : index
    %c1_137 = arith.constant 1 : index
    %c8_138 = arith.constant 8 : index
    %c0_139 = arith.constant 0 : index
    %84 = tpu.strided_load %arg12[%c0_136, %c1_137, %c8_138, %c0_139] {strides = array<i32: 1, 2, 2, 1>} : memref<2x6x13x8xf32, #tpu.memory_space<vmem>>, vector<2x2x2x8xf32>
    %85 = vector.shape_cast %84 : vector<2x2x2x8xf32> to vector<8x8xf32>
    %c0_140 = arith.constant 0 : index
    %c1_141 = arith.constant 1 : index
    %c9_142 = arith.constant 9 : index
    %c0_143 = arith.constant 0 : index
    %86 = tpu.strided_load %arg12[%c0_140, %c1_141, %c9_142, %c0_143] {strides = array<i32: 1, 2, 2, 1>} : memref<2x6x13x8xf32, #tpu.memory_space<vmem>>, vector<2x2x2x8xf32>
    %87 = vector.shape_cast %86 : vector<2x2x2x8xf32> to vector<8x8xf32>
    %c0_144 = arith.constant 0 : index
    %c1_145 = arith.constant 1 : index
    %c10_146 = arith.constant 10 : index
    %c0_147 = arith.constant 0 : index
    %88 = tpu.strided_load %arg12[%c0_144, %c1_145, %c10_146, %c0_147] {strides = array<i32: 1, 2, 2, 1>} : memref<2x6x13x8xf32, #tpu.memory_space<vmem>>, vector<2x2x2x8xf32>
    %89 = vector.shape_cast %88 : vector<2x2x2x8xf32> to vector<8x8xf32>
    %c0_148 = arith.constant 0 : index
    %c2_149 = arith.constant 2 : index
    %c7_150 = arith.constant 7 : index
    %c0_151 = arith.constant 0 : index
    %90 = tpu.strided_load %arg12[%c0_148, %c2_149, %c7_150, %c0_151] {strides = array<i32: 1, 2, 2, 1>} : memref<2x6x13x8xf32, #tpu.memory_space<vmem>>, vector<2x2x2x8xf32>
    %91 = vector.shape_cast %90 : vector<2x2x2x8xf32> to vector<8x8xf32>
    %c0_152 = arith.constant 0 : index
    %c2_153 = arith.constant 2 : index
    %c8_154 = arith.constant 8 : index
    %c0_155 = arith.constant 0 : index
    %92 = tpu.strided_load %arg12[%c0_152, %c2_153, %c8_154, %c0_155] {strides = array<i32: 1, 2, 2, 1>} : memref<2x6x13x8xf32, #tpu.memory_space<vmem>>, vector<2x2x2x8xf32>
    %93 = vector.shape_cast %92 : vector<2x2x2x8xf32> to vector<8x8xf32>
    %c0_156 = arith.constant 0 : index
    %c2_157 = arith.constant 2 : index
    %c9_158 = arith.constant 9 : index
    %c0_159 = arith.constant 0 : index
    %94 = tpu.strided_load %arg12[%c0_156, %c2_157, %c9_158, %c0_159] {strides = array<i32: 1, 2, 2, 1>} : memref<2x6x13x8xf32, #tpu.memory_space<vmem>>, vector<2x2x2x8xf32>
    %95 = vector.shape_cast %94 : vector<2x2x2x8xf32> to vector<8x8xf32>
    %c0_160 = arith.constant 0 : index
    %c2_161 = arith.constant 2 : index
    %c10_162 = arith.constant 10 : index
    %c0_163 = arith.constant 0 : index
    %96 = tpu.strided_load %arg12[%c0_160, %c2_161, %c10_162, %c0_163] {strides = array<i32: 1, 2, 2, 1>} : memref<2x6x13x8xf32, #tpu.memory_space<vmem>>, vector<2x2x2x8xf32>
    %97 = vector.shape_cast %96 : vector<2x2x2x8xf32> to vector<8x8xf32>
    %c0_164 = arith.constant 0 : index
    %c3_165 = arith.constant 3 : index
    %c7_166 = arith.constant 7 : index
    %c0_167 = arith.constant 0 : index
    %98 = tpu.strided_load %arg12[%c0_164, %c3_165, %c7_166, %c0_167] {strides = array<i32: 1, 2, 2, 1>} : memref<2x6x13x8xf32, #tpu.memory_space<vmem>>, vector<2x2x2x8xf32>
    %99 = vector.shape_cast %98 : vector<2x2x2x8xf32> to vector<8x8xf32>
    %c0_168 = arith.constant 0 : index
    %c3_169 = arith.constant 3 : index
    %c8_170 = arith.constant 8 : index
    %c0_171 = arith.constant 0 : index
    %100 = tpu.strided_load %arg12[%c0_168, %c3_169, %c8_170, %c0_171] {strides = array<i32: 1, 2, 2, 1>} : memref<2x6x13x8xf32, #tpu.memory_space<vmem>>, vector<2x2x2x8xf32>
    %101 = vector.shape_cast %100 : vector<2x2x2x8xf32> to vector<8x8xf32>
    %c0_172 = arith.constant 0 : index
    %c3_173 = arith.constant 3 : index
    %c9_174 = arith.constant 9 : index
    %c0_175 = arith.constant 0 : index
    %102 = tpu.strided_load %arg12[%c0_172, %c3_173, %c9_174, %c0_175] {strides = array<i32: 1, 2, 2, 1>} : memref<2x6x13x8xf32, #tpu.memory_space<vmem>>, vector<2x2x2x8xf32>
    %103 = vector.shape_cast %102 : vector<2x2x2x8xf32> to vector<8x8xf32>
    %c0_176 = arith.constant 0 : index
    %c3_177 = arith.constant 3 : index
    %c10_178 = arith.constant 10 : index
    %c0_179 = arith.constant 0 : index
    %104 = tpu.strided_load %arg12[%c0_176, %c3_177, %c10_178, %c0_179] {strides = array<i32: 1, 2, 2, 1>} : memref<2x6x13x8xf32, #tpu.memory_space<vmem>>, vector<2x2x2x8xf32>
    %105 = vector.shape_cast %104 : vector<2x2x2x8xf32> to vector<8x8xf32>
    %106 = tpu.concatenate %75, %77, %79, %81, %83, %85, %87, %89, %91, %93, %95, %97, %99, %101, %103, %105 in 1 : vector<8x8xf32>, vector<8x8xf32>, vector<8x8xf32>, vector<8x8xf32>, vector<8x8xf32>, vector<8x8xf32>, vector<8x8xf32>, vector<8x8xf32>, vector<8x8xf32>, vector<8x8xf32>, vector<8x8xf32>, vector<8x8xf32>, vector<8x8xf32>, vector<8x8xf32>, vector<8x8xf32>, vector<8x8xf32> -> vector<8x128xf32>
    %c0_180 = arith.constant 0 : index
    %c0_181 = arith.constant 0 : index
    %107 = vector.load %arg6[%c0_180, %c0_181] : memref<128x16xf32, #tpu.memory_space<vmem>>, vector<128x16xf32>
    %cst_182 = arith.constant dense<0.000000e+00> : vector<8x16xf32>
    %108 = tpu.matmul %106, %107, %cst_182 {dimension_numbers = #tpu.dot_dimension_numbers<[1], [0], [0], [1], [0, 0, 1, 1], [], []>} : vector<8x128xf32>, vector<128x16xf32>, vector<8x16xf32> -> vector<8x16xf32>
    %c0_183 = arith.constant 0 : index
    %c0_184 = arith.constant 0 : index
    %109 = vector.load %arg7[%c0_183, %c0_184] : memref<1x16xf32, #tpu.memory_space<vmem>>, vector<1x16xf32>
    %110 = vector.broadcast %109 : vector<1x16xf32> to vector<8x16xf32>
    %111 = arith.addf %108, %110 : vector<8x16xf32>
    %cst_185 = arith.constant 0.000000e+00 : f32
    %112 = vector.broadcast %cst_185 : f32 to vector<8x16xf32>
    %113 = arith.cmpf ogt, %111, %112 : vector<8x16xf32>
    %cst_186 = arith.constant 0.00999999977 : f32
    %114 = vector.broadcast %cst_186 : f32 to vector<8x16xf32>
    %115 = arith.mulf %114, %111 : vector<8x16xf32>
    %116 = arith.select %113, %111, %115 : vector<8x16xi1>, vector<8x16xf32>
    %cst_187 = arith.constant 0.000000e+00 : f32
    %117 = vector.broadcast %cst_187 : f32 to vector<2x1x11x16xf32>
    %c0_188 = arith.constant 0 : index
    %c0_189 = arith.constant 0 : index
    %c0_190 = arith.constant 0 : index
    %c0_191 = arith.constant 0 : index
    %118 = vector.load %arg13[%c0_188, %c0_189, %c0_190, %c0_191] : memref<2x4x11x16xf32, #tpu.memory_space<vmem>>, vector<2x1x11x16xf32>
    tpu.vector_store %arg13[%c0_188, %c0_189, %c0_190, %c0_191], %117 {strides = array<i32>} : memref<2x4x11x16xf32, #tpu.memory_space<vmem>>, vector<2x1x11x16xf32>,
    %cst_192 = arith.constant 0.000000e+00 : f32
    %119 = vector.broadcast %cst_192 : f32 to vector<2x1x11x16xf32>
    %c0_193 = arith.constant 0 : index
    %c3_194 = arith.constant 3 : index
    %c0_195 = arith.constant 0 : index
    %c0_196 = arith.constant 0 : index
    %120 = vector.load %arg13[%c0_193, %c3_194, %c0_195, %c0_196] : memref<2x4x11x16xf32, #tpu.memory_space<vmem>>, vector<2x1x11x16xf32>
    tpu.vector_store %arg13[%c0_193, %c3_194, %c0_195, %c0_196], %119 {strides = array<i32>} : memref<2x4x11x16xf32, #tpu.memory_space<vmem>>, vector<2x1x11x16xf32>,
    %cst_197 = arith.constant 0.000000e+00 : f32
    %121 = vector.broadcast %cst_197 : f32 to vector<2x4x1x16xf32>
    %c0_198 = arith.constant 0 : index
    %c0_199 = arith.constant 0 : index
    %c7_200 = arith.constant 7 : index
    %c0_201 = arith.constant 0 : index
    %122 = vector.load %arg13[%c0_198, %c0_199, %c7_200, %c0_201] : memref<2x4x11x16xf32, #tpu.memory_space<vmem>>, vector<2x4x1x16xf32>
    tpu.vector_store %arg13[%c0_198, %c0_199, %c7_200, %c0_201], %121 {strides = array<i32>} : memref<2x4x11x16xf32, #tpu.memory_space<vmem>>, vector<2x4x1x16xf32>,
    %cst_202 = arith.constant 0.000000e+00 : f32
    %123 = vector.broadcast %cst_202 : f32 to vector<2x4x1x16xf32>
    %c0_203 = arith.constant 0 : index
    %c0_204 = arith.constant 0 : index
    %c10_205 = arith.constant 10 : index
    %c0_206 = arith.constant 0 : index
    %124 = vector.load %arg13[%c0_203, %c0_204, %c10_205, %c0_206] : memref<2x4x11x16xf32, #tpu.memory_space<vmem>>, vector<2x4x1x16xf32>
    tpu.vector_store %arg13[%c0_203, %c0_204, %c10_205, %c0_206], %123 {strides = array<i32>} : memref<2x4x11x16xf32, #tpu.memory_space<vmem>>, vector<2x4x1x16xf32>,
    %125 = vector.shape_cast %116 : vector<8x16xf32> to vector<2x2x2x16xf32>
    %c0_207 = arith.constant 0 : index
    %c1_208 = arith.constant 1 : index
    %c8_209 = arith.constant 8 : index
    %c0_210 = arith.constant 0 : index
    %126 = vector.load %arg13[%c0_207, %c1_208, %c8_209, %c0_210] : memref<2x4x11x16xf32, #tpu.memory_space<vmem>>, vector<2x2x2x16xf32>
    tpu.vector_store %arg13[%c0_207, %c1_208, %c8_209, %c0_210], %125 {strides = array<i32>} : memref<2x4x11x16xf32, #tpu.memory_space<vmem>>, vector<2x2x2x16xf32>,
    %c0_211 = arith.constant 0 : index
    %c0_212 = arith.constant 0 : index
    %c7_213 = arith.constant 7 : index
    %c0_214 = arith.constant 0 : index
    %127 = vector.load %arg13[%c0_211, %c0_212, %c7_213, %c0_214] : memref<2x4x11x16xf32, #tpu.memory_space<vmem>>, vector<2x2x2x16xf32>
    %128 = vector.shape_cast %127 : vector<2x2x2x16xf32> to vector<8x16xf32>
    %c0_215 = arith.constant 0 : index
    %c0_216 = arith.constant 0 : index
    %c8_217 = arith.constant 8 : index
    %c0_218 = arith.constant 0 : index
    %129 = vector.load %arg13[%c0_215, %c0_216, %c8_217, %c0_218] : memref<2x4x11x16xf32, #tpu.memory_space<vmem>>, vector<2x2x2x16xf32>
    %130 = vector.shape_cast %129 : vector<2x2x2x16xf32> to vector<8x16xf32>
    %c0_219 = arith.constant 0 : index
    %c0_220 = arith.constant 0 : index
    %c9_221 = arith.constant 9 : index
    %c0_222 = arith.constant 0 : index
    %131 = vector.load %arg13[%c0_219, %c0_220, %c9_221, %c0_222] : memref<2x4x11x16xf32, #tpu.memory_space<vmem>>, vector<2x2x2x16xf32>
    %132 = vector.shape_cast %131 : vector<2x2x2x16xf32> to vector<8x16xf32>
    %c0_223 = arith.constant 0 : index
    %c1_224 = arith.constant 1 : index
    %c7_225 = arith.constant 7 : index
    %c0_226 = arith.constant 0 : index
    %133 = vector.load %arg13[%c0_223, %c1_224, %c7_225, %c0_226] : memref<2x4x11x16xf32, #tpu.memory_space<vmem>>, vector<2x2x2x16xf32>
    %134 = vector.shape_cast %133 : vector<2x2x2x16xf32> to vector<8x16xf32>
    %c0_227 = arith.constant 0 : index
    %c1_228 = arith.constant 1 : index
    %c8_229 = arith.constant 8 : index
    %c0_230 = arith.constant 0 : index
    %135 = vector.load %arg13[%c0_227, %c1_228, %c8_229, %c0_230] : memref<2x4x11x16xf32, #tpu.memory_space<vmem>>, vector<2x2x2x16xf32>
    %136 = vector.shape_cast %135 : vector<2x2x2x16xf32> to vector<8x16xf32>
    %c0_231 = arith.constant 0 : index
    %c1_232 = arith.constant 1 : index
    %c9_233 = arith.constant 9 : index
    %c0_234 = arith.constant 0 : index
    %137 = vector.load %arg13[%c0_231, %c1_232, %c9_233, %c0_234] : memref<2x4x11x16xf32, #tpu.memory_space<vmem>>, vector<2x2x2x16xf32>
    %138 = vector.shape_cast %137 : vector<2x2x2x16xf32> to vector<8x16xf32>
    %c0_235 = arith.constant 0 : index
    %c2_236 = arith.constant 2 : index
    %c7_237 = arith.constant 7 : index
    %c0_238 = arith.constant 0 : index
    %139 = vector.load %arg13[%c0_235, %c2_236, %c7_237, %c0_238] : memref<2x4x11x16xf32, #tpu.memory_space<vmem>>, vector<2x2x2x16xf32>
    %140 = vector.shape_cast %139 : vector<2x2x2x16xf32> to vector<8x16xf32>
    %c0_239 = arith.constant 0 : index
    %c2_240 = arith.constant 2 : index
    %c8_241 = arith.constant 8 : index
    %c0_242 = arith.constant 0 : index
    %141 = vector.load %arg13[%c0_239, %c2_240, %c8_241, %c0_242] : memref<2x4x11x16xf32, #tpu.memory_space<vmem>>, vector<2x2x2x16xf32>
    %142 = vector.shape_cast %141 : vector<2x2x2x16xf32> to vector<8x16xf32>
    %c0_243 = arith.constant 0 : index
    %c2_244 = arith.constant 2 : index
    %c9_245 = arith.constant 9 : index
    %c0_246 = arith.constant 0 : index
    %143 = vector.load %arg13[%c0_243, %c2_244, %c9_245, %c0_246] : memref<2x4x11x16xf32, #tpu.memory_space<vmem>>, vector<2x2x2x16xf32>
    %144 = vector.shape_cast %143 : vector<2x2x2x16xf32> to vector<8x16xf32>
    %145 = tpu.concatenate %128, %130, %132, %134, %136, %138, %140, %142, %144 in 1 : vector<8x16xf32>, vector<8x16xf32>, vector<8x16xf32>, vector<8x16xf32>, vector<8x16xf32>, vector<8x16xf32>, vector<8x16xf32>, vector<8x16xf32>, vector<8x16xf32> -> vector<8x144xf32>
    %c0_247 = arith.constant 0 : index
    %c0_248 = arith.constant 0 : index
    %146 = vector.load %arg8[%c0_247, %c0_248] : memref<1x144xf32, #tpu.memory_space<vmem>>, vector<1x144xf32>
    %147 = vector.broadcast %146 : vector<1x144xf32> to vector<8x144xf32>
    %148 = arith.mulf %145, %147 : vector<8x144xf32>
    %149 = vector.shape_cast %148 : vector<8x144xf32> to vector<1x8x144xf32>
    %cst_249 = arith.constant dense<0.000000e+00> : vector<1x8xf32>
    %150 = vector.multi_reduction <add>, %149, %cst_249 [2] : vector<1x8x144xf32> to vector<1x8xf32>
    %c0_250 = arith.constant 0 : index
    %c0_251 = arith.constant 0 : index
    %c0_252 = arith.constant 0 : index
    %151 = vector.load %arg10[%c0_250, %c0_251, %c0_252] : memref<1x1x8xf32, #tpu.memory_space<vmem>>, vector<1x1x8xf32>
    %152 = vector.shape_cast %151 : vector<1x1x8xf32> to vector<1x8xf32>
    %153 = vector.shape_cast %150 : vector<1x8xf32> to vector<1x1x8xf32>
    tpu.vector_store %arg10[%c0_250, %c0_251, %c0_252], %153 {strides = array<i32>} : memref<1x1x8xf32, #tpu.memory_space<vmem>>, vector<1x1x8xf32>,
    return
  }
  func.func @transform_0(%arg0: i32) -> (i32, i32) {
    %c0_i32 = arith.constant 0 : i32
    %c0_i32_0 = arith.constant 0 : i32
    return %arg0, %c0_i32 : i32, i32
  }
  func.func @transform_1(%arg0: i32) -> (i32, i32) {
    %c0_i32 = arith.constant 0 : i32
    %c0_i32_0 = arith.constant 0 : i32
    %c0_i32_1 = arith.constant 0 : i32
    return %c0_i32, %c0_i32_0 : i32, i32
  }
  func.func @transform_2(%arg0: i32) -> (i32, i32) {
    %c0_i32 = arith.constant 0 : i32
    %c0_i32_0 = arith.constant 0 : i32
    %c0_i32_1 = arith.constant 0 : i32
    return %c0_i32, %c0_i32_0 : i32, i32
  }
  func.func @transform_3(%arg0: i32) -> (i32, i32) {
    %c0_i32 = arith.constant 0 : i32
    %c0_i32_0 = arith.constant 0 : i32
    %c0_i32_1 = arith.constant 0 : i32
    return %c0_i32, %c0_i32_0 : i32, i32
  }
  func.func @transform_4(%arg0: i32) -> (i32, i32) {
    %c0_i32 = arith.constant 0 : i32
    %c0_i32_0 = arith.constant 0 : i32
    %c0_i32_1 = arith.constant 0 : i32
    return %c0_i32, %c0_i32_0 : i32, i32
  }
  func.func @transform_5(%arg0: i32) -> (i32, i32) {
    %c0_i32 = arith.constant 0 : i32
    %c0_i32_0 = arith.constant 0 : i32
    %c0_i32_1 = arith.constant 0 : i32
    return %c0_i32, %c0_i32_0 : i32, i32
  }
  func.func @transform_6(%arg0: i32) -> (i32, i32) {
    %c0_i32 = arith.constant 0 : i32
    %c0_i32_0 = arith.constant 0 : i32
    %c0_i32_1 = arith.constant 0 : i32
    return %c0_i32, %c0_i32_0 : i32, i32
  }
  func.func @transform_7(%arg0: i32) -> (i32, i32) {
    %c0_i32 = arith.constant 0 : i32
    %c0_i32_0 = arith.constant 0 : i32
    %c0_i32_1 = arith.constant 0 : i32
    return %c0_i32, %c0_i32_0 : i32, i32
  }
  func.func @transform_8(%arg0: i32) -> (i32, i32) {
    %c0_i32 = arith.constant 0 : i32
    %c0_i32_0 = arith.constant 0 : i32
    %c0_i32_1 = arith.constant 0 : i32
    return %c0_i32, %c0_i32_0 : i32, i32
  }
  func.func @transform_9(%arg0: i32) -> (i32, i32, i32) {
    %c0_i32 = arith.constant 0 : i32
    %c0_i32_0 = arith.constant 0 : i32
    %c0_i32_1 = arith.constant 0 : i32
    return %arg0, %c0_i32, %c0_i32_0 : i32, i32, i32
  }
}

</mosaic_0001>

<llo_original>
// kernel: _lambda_.1
$region0: #{_lambda_.1}
  #allocation0 [shape = 'u32[]', space=smem, size = 0x4, offset = 0x4, fixed_abs, tag = 'smem constant byte address 0x4 - core index']
  #allocation1 [shape = 'u32[144,128]{1,0:T(1,128)}', space=vmem, size = 0x12000, scoped, tag = 'internal scratch']
  #allocation2 [shape = 'f32[2,10,17,4]{3,2,1,0:T(8,128)}', space=vmem, size = 0x3c000, scoped, tag = 'scratch operand']
  #allocation3 [shape = 'f32[2,6,13,8]{3,2,1,0:T(8,128)}', space=vmem, size = 0x18000, scoped, tag = 'scratch operand']
  #allocation4 [shape = 'f32[2,4,11,16]{3,2,1,0:T(8,128)}', space=vmem, size = 0x10000, scoped, tag = 'scratch operand']
  #allocation5 [shape = 'f32[1,1]{1,0:T(1,128)S(1)}', space=vmem, size = 0x200, scoped, tag = 'scoped memory for _lambda_.1']
  %s0 = inlined_call_operand.vmem [shape: f32[128,48], index: 0, kind: input, shape index: {}]
  %s1 = inlined_call_operand.vmem [shape: f32[48,4], index: 1, kind: input, shape index: {}]
  %s2 = inlined_call_operand.vmem [shape: f32[1,4], index: 2, kind: input, shape index: {}]
  %s3 = inlined_call_operand.vmem [shape: f32[64,8], index: 3, kind: input, shape index: {}]
  %s4 = inlined_call_operand.vmem [shape: f32[1,8], index: 4, kind: input, shape index: {}]
  %s5 = inlined_call_operand.vmem [shape: f32[128,16], index: 5, kind: input, shape index: {}]
  %s6 = inlined_call_operand.vmem [shape: f32[1,16], index: 6, kind: input, shape index: {}]
  %s7 = inlined_call_operand.vmem [shape: f32[1,144], index: 7, kind: input, shape index: {}]
  %s8 = inlined_call_operand.<no memory space> [shape: f32[1,1], index: 8, kind: input, shape index: {}]
  %s9 = inlined_call_operand.vmem [shape: f32[1,1,8], index: 9, kind: output, shape index: {}]
  %s10 = sld [smem:[#allocation0]]
  $region46: #{_lambda_.1} parent=0
    _
  %s12 = ssub.s32 1, %s10
  %s13 = scalar_select 0, %s12, %s10
  %v14 = vstv %s8
  %15 = vst [vmem:[#allocation5] sm:$0x1] %v14
  // Predicated region
  $region2: #{_lambda_.1} parent=0 // pred_check
    _
  $region3: #{_lambda_.1} parent=0 // pred_check_branch
    %17 = sbr.rel (0) target = $region5
  $region4: #{_lambda_.1} parent=0 // pred_region
    _
  $region5: #{_lambda_.1} parent=0 // pred_fallthru
    _
  // Predicated region
  $region6: #{_lambda_.1} parent=0 // pred_check
    _
  $region7: #{_lambda_.1} parent=0 // pred_check_branch
    %19 = sbr.rel (0) target = $region9
  $region8: #{_lambda_.1} parent=0 // pred_region
    _
  $region9: #{_lambda_.1} parent=0 // pred_fallthru
    _
  // Predicated region
  $region10: #{_lambda_.1} parent=0 // pred_check
    _
  $region11: #{_lambda_.1} parent=0 // pred_check_branch
    %21 = sbr.rel (0) target = $region13
  $region12: #{_lambda_.1} parent=0 // pred_region
    _
  $region13: #{_lambda_.1} parent=0 // pred_fallthru
    _
  // Predicated region
  $region14: #{_lambda_.1} parent=0 // pred_check
    _
  $region15: #{_lambda_.1} parent=0 // pred_check_branch
    %23 = sbr.rel (0) target = $region17
  $region16: #{_lambda_.1} parent=0 // pred_region
    _
  $region17: #{_lambda_.1} parent=0 // pred_fallthru
    _
  // Predicated region
  $region18: #{_lambda_.1} parent=0 // pred_check
    _
  $region19: #{_lambda_.1} parent=0 // pred_check_branch
    %25 = sbr.rel (0) target = $region21
  $region20: #{_lambda_.1} parent=0 // pred_region
    _
  $region21: #{_lambda_.1} parent=0 // pred_fallthru
    _
  // Predicated region
  $region22: #{_lambda_.1} parent=0 // pred_check
    _
  $region23: #{_lambda_.1} parent=0 // pred_check_branch
    %27 = sbr.rel (0) target = $region25
  $region24: #{_lambda_.1} parent=0 // pred_region
    _
  $region25: #{_lambda_.1} parent=0 // pred_fallthru
    _
  // Predicated region
  $region26: #{_lambda_.1} parent=0 // pred_check
    _
  $region27: #{_lambda_.1} parent=0 // pred_check_branch
    %29 = sbr.rel (0) target = $region29
  $region28: #{_lambda_.1} parent=0 // pred_region
    _
  $region29: #{_lambda_.1} parent=0 // pred_fallthru
    _
  // Predicated region
  $region30: #{_lambda_.1} parent=0 // pred_check
    _
  $region31: #{_lambda_.1} parent=0 // pred_check_branch
    %31 = sbr.rel (0) target = $region33
  $region32: #{_lambda_.1} parent=0 // pred_region
    _
  $region33: #{_lambda_.1} parent=0 // pred_fallthru
    _
  // Predicated region
  $region34: #{_lambda_.1} parent=0 // pred_check
    _
  $region35: #{_lambda_.1} parent=0 // pred_check_branch
    %33 = sbr.rel (0) target = $region37
  $region36: #{_lambda_.1} parent=0 // pred_region
    _
  $region37: #{_lambda_.1} parent=0 // pred_fallthru
    _
  %v34 = vld [vmem:[%s0] sm:$0xff]
  %v35 = vld [vmem:[%s0 + $0x8] sm:$0xff]
  %v36 = vld [vmem:[%s0 + $0x10] sm:$0xff]
  %v37 = vld [vmem:[%s0 + $0x18] sm:$0xff]
  %v38 = vld [vmem:[%s0 + $0x20] sm:$0xff]
  %v39 = vld [vmem:[%s0 + $0x28] sm:$0xff]
  %v40 = vld [vmem:[%s0 + $0x30] sm:$0xff]
  %v41 = vld [vmem:[%s0 + $0x38] sm:$0xff]
  %v42 = vld [vmem:[%s0 + $0x40] sm:$0xff]
  %v43 = vld [vmem:[%s0 + $0x48] sm:$0xff]
  %v44 = vld [vmem:[%s0 + $0x50] sm:$0xff]
  %v45 = vld [vmem:[%s0 + $0x58] sm:$0xff]
  %v46 = vld [vmem:[%s0 + $0x60] sm:$0xff]
  %v47 = vld [vmem:[%s0 + $0x68] sm:$0xff]
  %v48 = vld [vmem:[%s0 + $0x70] sm:$0xff]
  %v49 = vld [vmem:[%s0 + $0x78] sm:$0xff]
  %v50 = vld [vmem:[%s1] sm:$0xff]
  %v51 = vld [vmem:[%s1 + $0x8] sm:$0xff]
  %v52 = vld [vmem:[%s1 + $0x10] sm:$0xff]
  %v53 = vld [vmem:[%s1 + $0x18] sm:$0xff]
  %v54 = vld [vmem:[%s1 + $0x20] sm:$0xff]
  %v55 = vld [vmem:[%s1 + $0x28] sm:$0xff]
  %v56 = vld [vmem:[%s2] sm:$0x1]
  %v58 = vlaneseq
  %v59 = vshrl.u32 %v58, 7
  %v60 = vsub.s32 0, %v59
  %v61 = vrot.slane %v56, %v60
  %vm63 = vcmask 392192
  %v65 = vsel %vm63, %v34, 0
  %v68 = vsel %vm63, %v35, 0
  %v71 = vsel %vm63, %v36, 0
  %v74 = vsel %vm63, %v37, 0
  %v77 = vsel %vm63, %v38, 0
  %v80 = vsel %vm63, %v39, 0
  %v83 = vsel %vm63, %v40, 0
  %v86 = vsel %vm63, %v41, 0
  %v89 = vsel %vm63, %v42, 0
  %v92 = vsel %vm63, %v43, 0
  %v95 = vsel %vm63, %v44, 0
  %v98 = vsel %vm63, %v45, 0
  %v101 = vsel %vm63, %v46, 0
  %v104 = vsel %vm63, %v47, 0
  %v107 = vsel %vm63, %v48, 0
  %v110 = vsel %vm63, %v49, 0
  %112 = vmatprep.subr.mxu0 0.0
  %113 = vmatpush1.msra.mxu0 0.0
  %114 = vmatprep.subr.mxu0 0.0
  %115 = vmatpush1.msra.mxu0 0.0
  %116 = vmatprep.subr.mxu0 0.0
  %117 = vmatpush1.msra.mxu0 0.0
  %118 = vmatprep.subr.mxu0 0.0
  %119 = vmatpush1.msra.mxu0 0.0
  %120 = vmatprep.subr.mxu0 0.0
  %121 = vmatpush1.msra.mxu0 0.0
  %122 = vmatprep.subr.mxu0 0.0
  %123 = vmatpush1.msra.mxu0 0.0
  %124 = vmatprep.subr.mxu0 0.0
  %125 = vmatpush1.msra.mxu0 0.0
  %126 = vmatprep.subr.mxu0 0.0
  %127 = vmatpush1.msra.mxu0 0.0
  %128 = vmatprep.subr.mxu0 0.0
  %129 = vmatpush1.msra.mxu0 0.0
  %130 = vmatprep.subr.mxu0 0.0
  %131 = vmatpush1.msra.mxu0 0.0
  %132 = vmatprep.subr.mxu0 0.0
  %133 = vmatpush1.msra.mxu0 %v55
  %134 = vmatprep.subr.mxu0 0.0
  %135 = vmatpush1.msra.mxu0 %v54
  %136 = vmatprep.subr.mxu0 0.0
  %137 = vmatpush1.msra.mxu0 %v53
  %138 = vmatprep.subr.mxu0 0.0
  %139 = vmatpush1.msra.mxu0 %v52
  %140 = vmatprep.subr.mxu0 0.0
  %141 = vmatpush1.msra.mxu0 %v51
  %142 = vmatprep.subr.mxu0 0.0
  %143 = vmatpush1.msra.mxu0 %v50
  %144 = vmatprep.subr.mxu0 0.0
  %145 = vmatpush2.msra.mxu0 0.0
  %146 = vmatprep.subr.mxu0 0.0
  %147 = vmatpush2.msra.mxu0 0.0
  %148 = vmatprep.subr.mxu0 0.0
  %149 = vmatpush2.msra.mxu0 0.0
  %150 = vmatprep.subr.mxu0 0.0
  %151 = vmatpush2.msra.mxu0 0.0
  %152 = vmatprep.subr.mxu0 0.0
  %153 = vmatpush2.msra.mxu0 0.0
  %154 = vmatprep.subr.mxu0 0.0
  %155 = vmatpush2.msra.mxu0 0.0
  %156 = vmatprep.subr.mxu0 0.0
  %157 = vmatpush2.msra.mxu0 0.0
  %158 = vmatprep.subr.mxu0 0.0
  %159 = vmatpush2.msra.mxu0 0.0
  %160 = vmatprep.subr.mxu0 0.0
  %161 = vmatpush2.msra.mxu0 0.0
  %162 = vmatprep.subr.mxu0 0.0
  %163 = vmatpush2.msra.mxu0 0.0
  %164 = vmatprep.subr.mxu0 0.0
  %165 = vmatpush2.msra.mxu0 0.0
  %166 = vmatprep.subr.mxu0 0.0
  %167 = vmatpush2.msra.mxu0 0.0
  %168 = vmatprep.subr.mxu0 0.0
  %169 = vmatpush2.msra.mxu0 0.0
  %170 = vmatprep.subr.mxu0 0.0
  %171 = vmatpush2.msra.mxu0 0.0
  %172 = vmatprep.subr.mxu0 0.0
  %173 = vmatpush2.msra.mxu0 0.0
  %174 = vmatprep.subr.mxu0 0.0
  %175 = vmatpush2.msra.mxu0 0.0
  %176 = vmatprep.mubr.f32.mxu0 0.0
  %177 = vmatmul.mubr.f32.gmra.mxu0 %v65
  %v178 = vpop.f32.mrf.mxu0
  %v179 = vadd.f32 %v61, %v178
  %v180 = vpop.f32.mrf.mxu0
  %181 = vmatprep.mubr.f32.mxu0 0.0
  %182 = vmatmul.mubr.f32.gmra.mxu0 %v68
  %v183 = vpop.f32.mrf.mxu0
  %v184 = vadd.f32 %v61, %v183
  %v185 = vpop.f32.mrf.mxu0
  %186 = vmatprep.mubr.f32.mxu0 0.0
  %187 = vmatmul.mubr.f32.gmra.mxu0 %v71
  %v188 = vpop.f32.mrf.mxu0
  %v189 = vadd.f32 %v61, %v188
  %v190 = vpop.f32.mrf.mxu0
  %191 = vmatprep.mubr.f32.mxu0 0.0
  %192 = vmatmul.mubr.f32.gmra.mxu0 %v74
  %v193 = vpop.f32.mrf.mxu0
  %v194 = vadd.f32 %v61, %v193
  %v195 = vpop.f32.mrf.mxu0
  %196 = vmatprep.mubr.f32.mxu0 0.0
  %197 = vmatmul.mubr.f32.gmra.mxu0 %v77
  %v198 = vpop.f32.mrf.mxu0
  %v199 = vadd.f32 %v61, %v198
  %v200 = vpop.f32.mrf.mxu0
  %201 = vmatprep.mubr.f32.mxu0 0.0
  %202 = vmatmul.mubr.f32.gmra.mxu0 %v80
  %v203 = vpop.f32.mrf.mxu0
  %v204 = vadd.f32 %v61, %v203
  %v205 = vpop.f32.mrf.mxu0
  %206 = vmatprep.mubr.f32.mxu0 0.0
  %207 = vmatmul.mubr.f32.gmra.mxu0 %v83
  %v208 = vpop.f32.mrf.mxu0
  %v209 = vadd.f32 %v61, %v208
  %v210 = vpop.f32.mrf.mxu0
  %211 = vmatprep.mubr.f32.mxu0 0.0
  %212 = vmatmul.mubr.f32.gmra.mxu0 %v86
  %v213 = vpop.f32.mrf.mxu0
  %v214 = vadd.f32 %v61, %v213
  %v215 = vpop.f32.mrf.mxu0
  %216 = vmatprep.mubr.f32.mxu0 0.0
  %217 = vmatmul.mubr.f32.gmra.mxu0 %v89
  %v218 = vpop.f32.mrf.mxu0
  %v219 = vadd.f32 %v61, %v218
  %v220 = vpop.f32.mrf.mxu0
  %221 = vmatprep.mubr.f32.mxu0 0.0
  %222 = vmatmul.mubr.f32.gmra.mxu0 %v92
  %v223 = vpop.f32.mrf.mxu0
  %v224 = vadd.f32 %v61, %v223
  %v225 = vpop.f32.mrf.mxu0
  %226 = vmatprep.mubr.f32.mxu0 0.0
  %227 = vmatmul.mubr.f32.gmra.mxu0 %v95
  %v228 = vpop.f32.mrf.mxu0
  %v229 = vadd.f32 %v61, %v228
  %v230 = vpop.f32.mrf.mxu0
  %231 = vmatprep.mubr.f32.mxu0 0.0
  %232 = vmatmul.mubr.f32.gmra.mxu0 %v98
  %v233 = vpop.f32.mrf.mxu0
  %v234 = vadd.f32 %v61, %v233
  %v235 = vpop.f32.mrf.mxu0
  %236 = vmatprep.mubr.f32.mxu0 0.0
  %237 = vmatmul.mubr.f32.gmra.mxu0 %v101
  %v238 = vpop.f32.mrf.mxu0
  %v239 = vadd.f32 %v61, %v238
  %v240 = vpop.f32.mrf.mxu0
  %241 = vmatprep.mubr.f32.mxu0 0.0
  %242 = vmatmul.mubr.f32.gmra.mxu0 %v104
  %v243 = vpop.f32.mrf.mxu0
  %v244 = vadd.f32 %v61, %v243
  %v245 = vpop.f32.mrf.mxu0
  %246 = vmatprep.mubr.f32.mxu0 0.0
  %247 = vmatmul.mubr.f32.gmra.mxu0 %v107
  %v248 = vpop.f32.mrf.mxu0
  %v249 = vadd.f32 %v61, %v248
  %v250 = vpop.f32.mrf.mxu0
  %251 = vmatprep.mubr.f32.mxu0 0.0
  %252 = vmatmul.mubr.f32.gmra.mxu0 %v110
  %v253 = vpop.f32.mrf.mxu0
  %v254 = vadd.f32 %v61, %v253
  %v255 = vpop.f32.mrf.mxu0
  %256 = vdwg.mxu0
  %vm257 = vcmp.gt.f32.partialorder %v179, 0.0
  %vm258 = vcmp.gt.f32.partialorder %v184, 0.0
  %vm259 = vcmp.gt.f32.partialorder %v189, 0.0
  %vm260 = vcmp.gt.f32.partialorder %v194, 0.0
  %vm261 = vcmp.gt.f32.partialorder %v199, 0.0
  %vm262 = vcmp.gt.f32.partialorder %v204, 0.0
  %vm263 = vcmp.gt.f32.partialorder %v209, 0.0
  %vm264 = vcmp.gt.f32.partialorder %v214, 0.0
  %vm265 = vcmp.gt.f32.partialorder %v219, 0.0
  %vm266 = vcmp.gt.f32.partialorder %v224, 0.0
  %vm267 = vcmp.gt.f32.partialorder %v229, 0.0
  %vm268 = vcmp.gt.f32.partialorder %v234, 0.0
  %vm269 = vcmp.gt.f32.partialorder %v239, 0.0
  %vm270 = vcmp.gt.f32.partialorder %v244, 0.0
  %vm271 = vcmp.gt.f32.partialorder %v249, 0.0
  %vm272 = vcmp.gt.f32.partialorder %v254, 0.0
  %v273 = vmul.f32 %v179, 0.01
  %v274 = vmul.f32 %v184, 0.01
  %v275 = vmul.f32 %v189, 0.01
  %v276 = vmul.f32 %v194, 0.01
  %v277 = vmul.f32 %v199, 0.01
  %v278 = vmul.f32 %v204, 0.01
  %v279 = vmul.f32 %v209, 0.01
  %v280 = vmul.f32 %v214, 0.01
  %v281 = vmul.f32 %v219, 0.01
  %v282 = vmul.f32 %v224, 0.01
  %v283 = vmul.f32 %v229, 0.01
  %v284 = vmul.f32 %v234, 0.01
  %v285 = vmul.f32 %v239, 0.01
  %v286 = vmul.f32 %v244, 0.01
  %v287 = vmul.f32 %v249, 0.01
  %v288 = vmul.f32 %v254, 0.01
  %v289 = vsel %vm257, %v179, %v273
  %v290 = vsel %vm258, %v184, %v274
  %v291 = vsel %vm259, %v189, %v275
  %v292 = vsel %vm260, %v194, %v276
  %v293 = vsel %vm261, %v199, %v277
  %v294 = vsel %vm262, %v204, %v278
  %v295 = vsel %vm263, %v209, %v279
  %v296 = vsel %vm264, %v214, %v280
  %v297 = vsel %vm265, %v219, %v281
  %v298 = vsel %vm266, %v224, %v282
  %v299 = vsel %vm267, %v229, %v283
  %v300 = vsel %vm268, %v234, %v284
  %v301 = vsel %vm269, %v239, %v285
  %v302 = vsel %vm270, %v244, %v286
  %v303 = vsel %vm271, %v249, %v287
  %v304 = vsel %vm272, %v254, %v288
  %vm305 = vcmask 31744
  %306 = vst.msk [vmem:[#allocation2] sm:$0xff] %vm305, 0.0
  %307 = vst.msk [vmem:[#allocation2 + $0x8] sm:$0xff] %vm305, 0.0
  %vm308 = vcmask 24576
  %309 = vst.msk [vmem:[#allocation2 + $0x10] sm:$0x1] %vm308, 0.0
  %310 = vst.msk [vmem:[#allocation2 + $0xf0] sm:$0xff] %vm305, 0.0
  %311 = vst.msk [vmem:[#allocation2 + $0xf8] sm:$0xff] %vm305, 0.0
  %312 = vst.msk [vmem:[#allocation2 + $0x100] sm:$0x1] %vm308, 0.0
  %s313 = scalar_lea.vmem [#allocation2], 216
  %314 = vst.msk [vmem:[%s313] sm:$0xff] %vm305, 0.0
  %315 = vst.msk [vmem:[%s313 + $0x8] sm:$0xff] %vm305, 0.0
  %316 = vst.msk [vmem:[%s313 + $0x10] sm:$0x1] %vm308, 0.0
  %317 = vst.msk [vmem:[%s313 + $0xf0] sm:$0xff] %vm305, 0.0
  %318 = vst.msk [vmem:[%s313 + $0xf8] sm:$0xff] %vm305, 0.0
  %319 = vst.msk [vmem:[%s313 + $0x100] sm:$0x1] %vm308, 0.0
  %320 = vst.msk [vmem:[#allocation2 + $0x7] sm:$0x1] %vm308, 0.0
  %321 = vst.msk [vmem:[#allocation2 + $0x1f] sm:$0x1] %vm308, 0.0
  %322 = vst.msk [vmem:[#allocation2 + $0x37] sm:$0x1] %vm308, 0.0
  %323 = vst.msk [vmem:[#allocation2 + $0x4f] sm:$0x1] %vm308, 0.0
  %324 = vst.msk [vmem:[#allocation2 + $0x67] sm:$0x1] %vm308, 0.0
  %325 = vst.msk [vmem:[#allocation2 + $0x7f] sm:$0x1] %vm308, 0.0
  %326 = vst.msk [vmem:[#allocation2 + $0x97] sm:$0x1] %vm308, 0.0
  %327 = vst.msk [vmem:[#allocation2 + $0xaf] sm:$0x1] %vm308, 0.0
  %328 = vst.msk [vmem:[#allocation2 + $0xc7] sm:$0x1] %vm308, 0.0
  %329 = vst.msk [vmem:[#allocation2 + $0xdf] sm:$0x1] %vm308, 0.0
  %330 = vst.msk [vmem:[#allocation2 + $0xf7] sm:$0x1] %vm308, 0.0
  %331 = vst.msk [vmem:[#allocation2 + $0x10f] sm:$0x1] %vm308, 0.0
  %332 = vst.msk [vmem:[#allocation2 + $0x127] sm:$0x1] %vm308, 0.0
  %333 = vst.msk [vmem:[#allocation2 + $0x13f] sm:$0x1] %vm308, 0.0
  %334 = vst.msk [vmem:[#allocation2 + $0x157] sm:$0x1] %vm308, 0.0
  %335 = vst.msk [vmem:[#allocation2 + $0x16f] sm:$0x1] %vm308, 0.0
  %336 = vst.msk [vmem:[#allocation2 + $0x187] sm:$0x1] %vm308, 0.0
  %337 = vst.msk [vmem:[#allocation2 + $0x19f] sm:$0x1] %vm308, 0.0
  %338 = vst.msk [vmem:[#allocation2 + $0x1b7] sm:$0x1] %vm308, 0.0
  %339 = vst.msk [vmem:[#allocation2 + $0x1cf] sm:$0x1] %vm308, 0.0
  %340 = vst.msk [vmem:[#allocation2 + $0x10] sm:$0x1] %vm308, 0.0
  %341 = vst.msk [vmem:[#allocation2 + $0x28] sm:$0x1] %vm308, 0.0
  %342 = vst.msk [vmem:[#allocation2 + $0x40] sm:$0x1] %vm308, 0.0
  %343 = vst.msk [vmem:[#allocation2 + $0x58] sm:$0x1] %vm308, 0.0
  %344 = vst.msk [vmem:[#allocation2 + $0x70] sm:$0x1] %vm308, 0.0
  %345 = vst.msk [vmem:[#allocation2 + $0x88] sm:$0x1] %vm308, 0.0
  %346 = vst.msk [vmem:[#allocation2 + $0xa0] sm:$0x1] %vm308, 0.0
  %347 = vst.msk [vmem:[#allocation2 + $0xb8] sm:$0x1] %vm308, 0.0
  %348 = vst.msk [vmem:[#allocation2 + $0xd0] sm:$0x1] %vm308, 0.0
  %349 = vst.msk [vmem:[#allocation2 + $0xe8] sm:$0x1] %vm308, 0.0
  %350 = vst.msk [vmem:[#allocation2 + $0x100] sm:$0x1] %vm308, 0.0
  %351 = vst.msk [vmem:[#allocation2 + $0x118] sm:$0x1] %vm308, 0.0
  %352 = vst.msk [vmem:[#allocation2 + $0x130] sm:$0x1] %vm308, 0.0
  %353 = vst.msk [vmem:[#allocation2 + $0x148] sm:$0x1] %vm308, 0.0
  %354 = vst.msk [vmem:[#allocation2 + $0x160] sm:$0x1] %vm308, 0.0
  %355 = vst.msk [vmem:[#allocation2 + $0x178] sm:$0x1] %vm308, 0.0
  %356 = vst.msk [vmem:[#allocation2 + $0x190] sm:$0x1] %vm308, 0.0
  %357 = vst.msk [vmem:[#allocation2 + $0x1a8] sm:$0x1] %vm308, 0.0
  %358 = vst.msk [vmem:[#allocation2 + $0x1c0] sm:$0x1] %vm308, 0.0
  %359 = vst.msk [vmem:[#allocation2 + $0x1d8] sm:$0x1] %vm308, 0.0
  %s360 = scalar_lea.vmem [#allocation2], 24
  %361 = vst.msk [vmem:[%s360 + $0x8] sm:$0xff] %vm305, %v289
  %362 = vst.msk [vmem:[%s360 + $0x20] sm:$0xff] %vm305, %v290
  %363 = vst.msk [vmem:[%s360 + $0x38] sm:$0xff] %vm305, %v291
  %364 = vst.msk [vmem:[%s360 + $0x50] sm:$0xff] %vm305, %v292
  %365 = vst.msk [vmem:[%s360 + $0x68] sm:$0xff] %vm305, %v293
  %366 = vst.msk [vmem:[%s360 + $0x80] sm:$0xff] %vm305, %v294
  %367 = vst.msk [vmem:[%s360 + $0x98] sm:$0xff] %vm305, %v295
  %368 = vst.msk [vmem:[%s360 + $0xb0] sm:$0xff] %vm305, %v296
  %369 = vst.msk [vmem:[%s360 + $0xf8] sm:$0xff] %vm305, %v297
  %370 = vst.msk [vmem:[%s360 + $0x110] sm:$0xff] %vm305, %v298
  %371 = vst.msk [vmem:[%s360 + $0x128] sm:$0xff] %vm305, %v299
  %372 = vst.msk [vmem:[%s360 + $0x140] sm:$0xff] %vm305, %v300
  %373 = vst.msk [vmem:[%s360 + $0x158] sm:$0xff] %vm305, %v301
  %374 = vst.msk [vmem:[%s360 + $0x170] sm:$0xff] %vm305, %v302
  %375 = vst.msk [vmem:[%s360 + $0x188] sm:$0xff] %vm305, %v303
  %376 = vst.msk [vmem:[%s360 + $0x1a0] sm:$0xff] %vm305, %v304
  %s377 = scalar_lea.vmem [#allocation2], 7
  %v378 = vld [vmem:[%s377] ss:$2 sm:$0xf]
  %s379 = scalar_lea.vmem [#allocation2], 55
  %v380 = vld [vmem:[%s379] ss:$2 sm:$0xf]
  %s381 = scalar_lea.vmem [#allocation2], 103
  %v382 = vld [vmem:[%s381] ss:$2 sm:$0xf]
  %s383 = scalar_lea.vmem [#allocation2], 151
  %v384 = vld [vmem:[%s383] ss:$2 sm:$0xf]
  %s385 = scalar_lea.vmem [#allocation2], 247
  %v386 = vld [vmem:[%s385] ss:$2 sm:$0xf]
  %s387 = scalar_lea.vmem [#allocation2], 295
  %v388 = vld [vmem:[%s387] ss:$2 sm:$0xf]
  %s389 = scalar_lea.vmem [#allocation2], 343
  %v390 = vld [vmem:[%s389] ss:$2 sm:$0xf]
  %s391 = scalar_lea.vmem [#allocation2], 391
  %v392 = vld [vmem:[%s391] ss:$2 sm:$0xf]
  %s393 = scalar_lea.vmem [#allocation2], 8
  %v394 = vld [vmem:[%s393] ss:$2 sm:$0xf]
  %s395 = scalar_lea.vmem [#allocation2], 56
  %v396 = vld [vmem:[%s395] ss:$2 sm:$0xf]
  %s397 = scalar_lea.vmem [#allocation2], 104
  %v398 = vld [vmem:[%s397] ss:$2 sm:$0xf]
  %s399 = scalar_lea.vmem [#allocation2], 152
  %v400 = vld [vmem:[%s399] ss:$2 sm:$0xf]
  %s401 = scalar_lea.vmem [#allocation2], 248
  %v402 = vld [vmem:[%s401] ss:$2 sm:$0xf]
  %s403 = scalar_lea.vmem [#allocation2], 296
  %v404 = vld [vmem:[%s403] ss:$2 sm:$0xf]
  %s405 = scalar_lea.vmem [#allocation2], 344
  %v406 = vld [vmem:[%s405] ss:$2 sm:$0xf]
  %s407 = scalar_lea.vmem [#allocation2], 392
  %v408 = vld [vmem:[%s407] ss:$2 sm:$0xf]
  %s409 = scalar_lea.vmem [#allocation2], 9
  %v410 = vld [vmem:[%s409] ss:$2 sm:$0xf]
  %s411 = scalar_lea.vmem [#allocation2], 57
  %v412 = vld [vmem:[%s411] ss:$2 sm:$0xf]
  %s413 = scalar_lea.vmem [#allocation2], 105
  %v414 = vld [vmem:[%s413] ss:$2 sm:$0xf]
  %s415 = scalar_lea.vmem [#allocation2], 153
  %v416 = vld [vmem:[%s415] ss:$2 sm:$0xf]
  %s417 = scalar_lea.vmem [#allocation2], 249
  %v418 = vld [vmem:[%s417] ss:$2 sm:$0xf]
  %s419 = scalar_lea.vmem [#allocation2], 297
  %v420 = vld [vmem:[%s419] ss:$2 sm:$0xf]
  %s421 = scalar_lea.vmem [#allocation2], 345
  %v422 = vld [vmem:[%s421] ss:$2 sm:$0xf]
  %s423 = scalar_lea.vmem [#allocation2], 393
  %v424 = vld [vmem:[%s423] ss:$2 sm:$0xf]
  %s425 = scalar_lea.vmem [#allocation2], 10
  %v426 = vld [vmem:[%s425] ss:$2 sm:$0xf]
  %s427 = scalar_lea.vmem [#allocation2], 58
  %v428 = vld [vmem:[%s427] ss:$2 sm:$0xf]
  %s429 = scalar_lea.vmem [#allocation2], 106
  %v430 = vld [vmem:[%s429] ss:$2 sm:$0xf]
  %s431 = scalar_lea.vmem [#allocation2], 154
  %v432 = vld [vmem:[%s431] ss:$2 sm:$0xf]
  %s433 = scalar_lea.vmem [#allocation2], 250
  %v434 = vld [vmem:[%s433] ss:$2 sm:$0xf]
  %s435 = scalar_lea.vmem [#allocation2], 298
  %v436 = vld [vmem:[%s435] ss:$2 sm:$0xf]
  %s437 = scalar_lea.vmem [#allocation2], 346
  %v438 = vld [vmem:[%s437] ss:$2 sm:$0xf]
  %s439 = scalar_lea.vmem [#allocation2], 394
  %v440 = vld [vmem:[%s439] ss:$2 sm:$0xf]
  %s441 = scalar_lea.vmem %s360, 7 [#allocation2]
  %v442 = vld [vmem:[%s441] ss:$2 sm:$0xf]
  %s443 = scalar_lea.vmem %s360, 55 [#allocation2]
  %v444 = vld [vmem:[%s443] ss:$2 sm:$0xf]
  %s445 = scalar_lea.vmem %s360, 103 [#allocation2]
  %v446 = vld [vmem:[%s445] ss:$2 sm:$0xf]
  %s447 = scalar_lea.vmem %s360, 151 [#allocation2]
  %v448 = vld [vmem:[%s447] ss:$2 sm:$0xf]
  %s449 = scalar_lea.vmem %s360, 247 [#allocation2]
  %v450 = vld [vmem:[%s449] ss:$2 sm:$0xf]
  %s451 = scalar_lea.vmem %s360, 295 [#allocation2]
  %v452 = vld [vmem:[%s451] ss:$2 sm:$0xf]
  %s453 = scalar_lea.vmem %s360, 343 [#allocation2]
  %v454 = vld [vmem:[%s453] ss:$2 sm:$0xf]
  %s455 = scalar_lea.vmem %s360, 391 [#allocation2]
  %v456 = vld [vmem:[%s455] ss:$2 sm:$0xf]
  %s457 = scalar_lea.vmem %s360, 8 [#allocation2]
  %v458 = vld [vmem:[%s457] ss:$2 sm:$0xf]
  %s459 = scalar_lea.vmem %s360, 56 [#allocation2]
  %v460 = vld [vmem:[%s459] ss:$2 sm:$0xf]
  %s461 = scalar_lea.vmem %s360, 104 [#allocation2]
  %v462 = vld [vmem:[%s461] ss:$2 sm:$0xf]
  %s463 = scalar_lea.vmem %s360, 152 [#allocation2]
  %v464 = vld [vmem:[%s463] ss:$2 sm:$0xf]
  %s465 = scalar_lea.vmem %s360, 248 [#allocation2]
  %v466 = vld [vmem:[%s465] ss:$2 sm:$0xf]
  %s467 = scalar_lea.vmem %s360, 296 [#allocation2]
  %v468 = vld [vmem:[%s467] ss:$2 sm:$0xf]
  %s469 = scalar_lea.vmem %s360, 344 [#allocation2]
  %v470 = vld [vmem:[%s469] ss:$2 sm:$0xf]
  %s471 = scalar_lea.vmem %s360, 392 [#allocation2]
  %v472 = vld [vmem:[%s471] ss:$2 sm:$0xf]
  %s473 = scalar_lea.vmem %s360, 9 [#allocation2]
  %v474 = vld [vmem:[%s473] ss:$2 sm:$0xf]
  %s475 = scalar_lea.vmem %s360, 57 [#allocation2]
  %v476 = vld [vmem:[%s475] ss:$2 sm:$0xf]
  %s477 = scalar_lea.vmem %s360, 105 [#allocation2]
  %v478 = vld [vmem:[%s477] ss:$2 sm:$0xf]
  %s479 = scalar_lea.vmem %s360, 153 [#allocation2]
  %v480 = vld [vmem:[%s479] ss:$2 sm:$0xf]
  %s481 = scalar_lea.vmem %s360, 249 [#allocation2]
  %v482 = vld [vmem:[%s481] ss:$2 sm:$0xf]
  %s483 = scalar_lea.vmem %s360, 297 [#allocation2]
  %v484 = vld [vmem:[%s483] ss:$2 sm:$0xf]
  %s485 = scalar_lea.vmem %s360, 345 [#allocation2]
  %v486 = vld [vmem:[%s485] ss:$2 sm:$0xf]
  %s487 = scalar_lea.vmem %s360, 393 [#allocation2]
  %v488 = vld [vmem:[%s487] ss:$2 sm:$0xf]
  %s489 = scalar_lea.vmem %s360, 10 [#allocation2]
  %v490 = vld [vmem:[%s489] ss:$2 sm:$0xf]
  %s491 = scalar_lea.vmem %s360, 58 [#allocation2]
  %v492 = vld [vmem:[%s491] ss:$2 sm:$0xf]
  %s493 = scalar_lea.vmem %s360, 106 [#allocation2]
  %v494 = vld [vmem:[%s493] ss:$2 sm:$0xf]
  %s495 = scalar_lea.vmem %s360, 154 [#allocation2]
  %v496 = vld [vmem:[%s495] ss:$2 sm:$0xf]
  %s497 = scalar_lea.vmem %s360, 250 [#allocation2]
  %v498 = vld [vmem:[%s497] ss:$2 sm:$0xf]
  %s499 = scalar_lea.vmem %s360, 298 [#allocation2]
  %v500 = vld [vmem:[%s499] ss:$2 sm:$0xf]
  %s501 = scalar_lea.vmem %s360, 346 [#allocation2]
  %v502 = vld [vmem:[%s501] ss:$2 sm:$0xf]
  %s503 = scalar_lea.vmem %s360, 394 [#allocation2]
  %v504 = vld [vmem:[%s503] ss:$2 sm:$0xf]
  %s505 = scalar_lea.vmem [#allocation2], 48
  %s506 = scalar_lea.vmem %s505, 7 [#allocation2]
  %v507 = vld [vmem:[%s506] ss:$2 sm:$0xf]
  %s508 = scalar_lea.vmem %s505, 55 [#allocation2]
  %v509 = vld [vmem:[%s508] ss:$2 sm:$0xf]
  %s510 = scalar_lea.vmem %s505, 103 [#allocation2]
  %v511 = vld [vmem:[%s510] ss:$2 sm:$0xf]
  %s512 = scalar_lea.vmem %s505, 151 [#allocation2]
  %v513 = vld [vmem:[%s512] ss:$2 sm:$0xf]
  %s514 = scalar_lea.vmem %s505, 247 [#allocation2]
  %v515 = vld [vmem:[%s514] ss:$2 sm:$0xf]
  %s516 = scalar_lea.vmem %s505, 295 [#allocation2]
  %v517 = vld [vmem:[%s516] ss:$2 sm:$0xf]
  %s518 = scalar_lea.vmem %s505, 343 [#allocation2]
  %v519 = vld [vmem:[%s518] ss:$2 sm:$0xf]
  %s520 = scalar_lea.vmem %s505, 391 [#allocation2]
  %v521 = vld [vmem:[%s520] ss:$2 sm:$0xf]
  %s522 = scalar_lea.vmem %s505, 8 [#allocation2]
  %v523 = vld [vmem:[%s522] ss:$2 sm:$0xf]
  %s524 = scalar_lea.vmem %s505, 56 [#allocation2]
  %v525 = vld [vmem:[%s524] ss:$2 sm:$0xf]
  %s526 = scalar_lea.vmem %s505, 104 [#allocation2]
  %v527 = vld [vmem:[%s526] ss:$2 sm:$0xf]
  %s528 = scalar_lea.vmem %s505, 152 [#allocation2]
  %v529 = vld [vmem:[%s528] ss:$2 sm:$0xf]
  %s530 = scalar_lea.vmem %s505, 248 [#allocation2]
  %v531 = vld [vmem:[%s530] ss:$2 sm:$0xf]
  %s532 = scalar_lea.vmem %s505, 296 [#allocation2]
  %v533 = vld [vmem:[%s532] ss:$2 sm:$0xf]
  %s534 = scalar_lea.vmem %s505, 344 [#allocation2]
  %v535 = vld [vmem:[%s534] ss:$2 sm:$0xf]
  %s536 = scalar_lea.vmem %s505, 392 [#allocation2]
  %v537 = vld [vmem:[%s536] ss:$2 sm:$0xf]
  %s538 = scalar_lea.vmem %s505, 9 [#allocation2]
  %v539 = vld [vmem:[%s538] ss:$2 sm:$0xf]
  %s540 = scalar_lea.vmem %s505, 57 [#allocation2]
  %v541 = vld [vmem:[%s540] ss:$2 sm:$0xf]
  %s542 = scalar_lea.vmem %s505, 105 [#allocation2]
  %v543 = vld [vmem:[%s542] ss:$2 sm:$0xf]
  %s544 = scalar_lea.vmem %s505, 153 [#allocation2]
  %v545 = vld [vmem:[%s544] ss:$2 sm:$0xf]
  %s546 = scalar_lea.vmem %s505, 249 [#allocation2]
  %v547 = vld [vmem:[%s546] ss:$2 sm:$0xf]
  %s548 = scalar_lea.vmem %s505, 297 [#allocation2]
  %v549 = vld [vmem:[%s548] ss:$2 sm:$0xf]
  %s550 = scalar_lea.vmem %s505, 345 [#allocation2]
  %v551 = vld [vmem:[%s550] ss:$2 sm:$0xf]
  %s552 = scalar_lea.vmem %s505, 393 [#allocation2]
  %v553 = vld [vmem:[%s552] ss:$2 sm:$0xf]
  %s554 = scalar_lea.vmem %s505, 10 [#allocation2]
  %v555 = vld [vmem:[%s554] ss:$2 sm:$0xf]
  %s556 = scalar_lea.vmem %s505, 58 [#allocation2]
  %v557 = vld [vmem:[%s556] ss:$2 sm:$0xf]
  %s558 = scalar_lea.vmem %s505, 106 [#allocation2]
  %v559 = vld [vmem:[%s558] ss:$2 sm:$0xf]
  %s560 = scalar_lea.vmem %s505, 154 [#allocation2]
  %v561 = vld [vmem:[%s560] ss:$2 sm:$0xf]
  %s562 = scalar_lea.vmem %s505, 250 [#allocation2]
  %v563 = vld [vmem:[%s562] ss:$2 sm:$0xf]
  %s564 = scalar_lea.vmem %s505, 298 [#allocation2]
  %v565 = vld [vmem:[%s564] ss:$2 sm:$0xf]
  %s566 = scalar_lea.vmem %s505, 346 [#allocation2]
  %v567 = vld [vmem:[%s566] ss:$2 sm:$0xf]
  %s568 = scalar_lea.vmem %s505, 394 [#allocation2]
  %v569 = vld [vmem:[%s568] ss:$2 sm:$0xf]
  %s570 = scalar_lea.vmem [#allocation2], 72
  %s571 = scalar_lea.vmem %s570, 7 [#allocation2]
  %v572 = vld [vmem:[%s571] ss:$2 sm:$0xf]
  %s573 = scalar_lea.vmem %s570, 55 [#allocation2]
  %v574 = vld [vmem:[%s573] ss:$2 sm:$0xf]
  %s575 = scalar_lea.vmem %s570, 103 [#allocation2]
  %v576 = vld [vmem:[%s575] ss:$2 sm:$0xf]
  %s577 = scalar_lea.vmem %s570, 151 [#allocation2]
  %v578 = vld [vmem:[%s577] ss:$2 sm:$0xf]
  %s579 = scalar_lea.vmem %s570, 247 [#allocation2]
  %v580 = vld [vmem:[%s579] ss:$2 sm:$0xf]
  %s581 = scalar_lea.vmem %s570, 295 [#allocation2]
  %v582 = vld [vmem:[%s581] ss:$2 sm:$0xf]
  %s583 = scalar_lea.vmem %s570, 343 [#allocation2]
  %v584 = vld [vmem:[%s583] ss:$2 sm:$0xf]
  %s585 = scalar_lea.vmem %s570, 391 [#allocation2]
  %v586 = vld [vmem:[%s585] ss:$2 sm:$0xf]
  %s587 = scalar_lea.vmem %s570, 8 [#allocation2]
  %v588 = vld [vmem:[%s587] ss:$2 sm:$0xf]
  %s589 = scalar_lea.vmem %s570, 56 [#allocation2]
  %v590 = vld [vmem:[%s589] ss:$2 sm:$0xf]
  %s591 = scalar_lea.vmem %s570, 104 [#allocation2]
  %v592 = vld [vmem:[%s591] ss:$2 sm:$0xf]
  %s593 = scalar_lea.vmem %s570, 152 [#allocation2]
  %v594 = vld [vmem:[%s593] ss:$2 sm:$0xf]
  %s595 = scalar_lea.vmem %s570, 248 [#allocation2]
  %v596 = vld [vmem:[%s595] ss:$2 sm:$0xf]
  %s597 = scalar_lea.vmem %s570, 296 [#allocation2]
  %v598 = vld [vmem:[%s597] ss:$2 sm:$0xf]
  %s599 = scalar_lea.vmem %s570, 344 [#allocation2]
  %v600 = vld [vmem:[%s599] ss:$2 sm:$0xf]
  %s601 = scalar_lea.vmem %s570, 392 [#allocation2]
  %v602 = vld [vmem:[%s601] ss:$2 sm:$0xf]
  %s603 = scalar_lea.vmem %s570, 9 [#allocation2]
  %v604 = vld [vmem:[%s603] ss:$2 sm:$0xf]
  %s605 = scalar_lea.vmem %s570, 57 [#allocation2]
  %v606 = vld [vmem:[%s605] ss:$2 sm:$0xf]
  %s607 = scalar_lea.vmem %s570, 105 [#allocation2]
  %v608 = vld [vmem:[%s607] ss:$2 sm:$0xf]
  %s609 = scalar_lea.vmem %s570, 153 [#allocation2]
  %v610 = vld [vmem:[%s609] ss:$2 sm:$0xf]
  %s611 = scalar_lea.vmem %s570, 249 [#allocation2]
  %v612 = vld [vmem:[%s611] ss:$2 sm:$0xf]
  %s613 = scalar_lea.vmem %s570, 297 [#allocation2]
  %v614 = vld [vmem:[%s613] ss:$2 sm:$0xf]
  %s615 = scalar_lea.vmem %s570, 345 [#allocation2]
  %v616 = vld [vmem:[%s615] ss:$2 sm:$0xf]
  %s617 = scalar_lea.vmem %s570, 393 [#allocation2]
  %v618 = vld [vmem:[%s617] ss:$2 sm:$0xf]
  %s619 = scalar_lea.vmem %s570, 10 [#allocation2]
  %v620 = vld [vmem:[%s619] ss:$2 sm:$0xf]
  %s621 = scalar_lea.vmem %s570, 58 [#allocation2]
  %v622 = vld [vmem:[%s621] ss:$2 sm:$0xf]
  %s623 = scalar_lea.vmem %s570, 106 [#allocation2]
  %v624 = vld [vmem:[%s623] ss:$2 sm:$0xf]
  %s625 = scalar_lea.vmem %s570, 154 [#allocation2]
  %v626 = vld [vmem:[%s625] ss:$2 sm:$0xf]
  %s627 = scalar_lea.vmem %s570, 250 [#allocation2]
  %v628 = vld [vmem:[%s627] ss:$2 sm:$0xf]
  %s629 = scalar_lea.vmem %s570, 298 [#allocation2]
  %v630 = vld [vmem:[%s629] ss:$2 sm:$0xf]
  %s631 = scalar_lea.vmem %s570, 346 [#allocation2]
  %v632 = vld [vmem:[%s631] ss:$2 sm:$0xf]
  %s633 = scalar_lea.vmem %s570, 394 [#allocation2]
  %v634 = vld [vmem:[%s633] ss:$2 sm:$0xf]
  %v643 = vcombine.low %v378, %v380
  %v644 = vcombine.low %v382, %v384
  %v645 = vcombine.low %v386, %v388
  %v646 = vcombine.low %v390, %v392
  %v659 = vcombine.low %v394, %v396
  %v660 = vcombine.low %v398, %v400
  %v661 = vcombine.low %v402, %v404
  %v662 = vcombine.low %v406, %v408
  %663 = vrot.lane.b32.xlu0 %v659, 4
  %v664 = vpop.permute.xlu0 %663
  %665 = vrot.lane.b32.xlu0 %v660, 4
  %v666 = vpop.permute.xlu0 %665
  %667 = vrot.lane.b32.xlu0 %v661, 4
  %v668 = vpop.permute.xlu0 %667
  %669 = vrot.lane.b32.xlu0 %v662, 4
  %v670 = vpop.permute.xlu0 %669
  %v683 = vcombine.low %v410, %v412
  %v684 = vcombine.low %v414, %v416
  %v685 = vcombine.low %v418, %v420
  %v686 = vcombine.low %v422, %v424
  %687 = vrot.lane.b32.xlu0 %v683, 8
  %v688 = vpop.permute.xlu0 %687
  %689 = vrot.lane.b32.xlu0 %v684, 8
  %v690 = vpop.permute.xlu0 %689
  %691 = vrot.lane.b32.xlu0 %v685, 8
  %v692 = vpop.permute.xlu0 %691
  %693 = vrot.lane.b32.xlu0 %v686, 8
  %v694 = vpop.permute.xlu0 %693
  %v707 = vcombine.low %v426, %v428
  %v708 = vcombine.low %v430, %v432
  %v709 = vcombine.low %v434, %v436
  %v710 = vcombine.low %v438, %v440
  %711 = vrot.lane.b32.xlu0 %v707, 12
  %v712 = vpop.permute.xlu0 %711
  %713 = vrot.lane.b32.xlu0 %v708, 12
  %v714 = vpop.permute.xlu0 %713
  %715 = vrot.lane.b32.xlu0 %v709, 12
  %v716 = vpop.permute.xlu0 %715
  %717 = vrot.lane.b32.xlu0 %v710, 12
  %v718 = vpop.permute.xlu0 %717
  %v731 = vcombine.low %v442, %v444
  %v732 = vcombine.low %v446, %v448
  %v733 = vcombine.low %v450, %v452
  %v734 = vcombine.low %v454, %v456
  %735 = vrot.lane.b32.xlu0 %v731, 16
  %v736 = vpop.permute.xlu0 %735
  %737 = vrot.lane.b32.xlu0 %v732, 16
  %v738 = vpop.permute.xlu0 %737
  %739 = vrot.lane.b32.xlu0 %v733, 16
  %v740 = vpop.permute.xlu0 %739
  %741 = vrot.lane.b32.xlu0 %v734, 16
  %v742 = vpop.permute.xlu0 %741
  %v755 = vcombine.low %v458, %v460
  %v756 = vcombine.low %v462, %v464
  %v757 = vcombine.low %v466, %v468
  %v758 = vcombine.low %v470, %v472
  %759 = vrot.lane.b32.xlu0 %v755, 20
  %v760 = vpop.permute.xlu0 %759
  %761 = vrot.lane.b32.xlu0 %v756, 20
  %v762 = vpop.permute.xlu0 %761
  %763 = vrot.lane.b32.xlu0 %v757, 20
  %v764 = vpop.permute.xlu0 %763
  %765 = vrot.lane.b32.xlu0 %v758, 20
  %v766 = vpop.permute.xlu0 %765
  %v779 = vcombine.low %v474, %v476
  %v780 = vcombine.low %v478, %v480
  %v781 = vcombine.low %v482, %v484
  %v782 = vcombine.low %v486, %v488
  %783 = vrot.lane.b32.xlu0 %v779, 24
  %v784 = vpop.permute.xlu0 %783
  %785 = vrot.lane.b32.xlu0 %v780, 24
  %v786 = vpop.permute.xlu0 %785
  %787 = vrot.lane.b32.xlu0 %v781, 24
  %v788 = vpop.permute.xlu0 %787
  %789 = vrot.lane.b32.xlu0 %v782, 24
  %v790 = vpop.permute.xlu0 %789
  %v803 = vcombine.low %v490, %v492
  %v804 = vcombine.low %v494, %v496
  %v805 = vcombine.low %v498, %v500
  %v806 = vcombine.low %v502, %v504
  %807 = vrot.lane.b32.xlu0 %v803, 28
  %v808 = vpop.permute.xlu0 %807
  %809 = vrot.lane.b32.xlu0 %v804, 28
  %v810 = vpop.permute.xlu0 %809
  %811 = vrot.lane.b32.xlu0 %v805, 28
  %v812 = vpop.permute.xlu0 %811
  %813 = vrot.lane.b32.xlu0 %v806, 28
  %v814 = vpop.permute.xlu0 %813
  %v827 = vcombine.low %v507, %v509
  %v828 = vcombine.low %v511, %v513
  %v829 = vcombine.low %v515, %v517
  %v830 = vcombine.low %v519, %v521
  %831 = vrot.lane.b32.xlu0 %v827, 32
  %v832 = vpop.permute.xlu0 %831
  %833 = vrot.lane.b32.xlu0 %v828, 32
  %v834 = vpop.permute.xlu0 %833
  %835 = vrot.lane.b32.xlu0 %v829, 32
  %v836 = vpop.permute.xlu0 %835
  %837 = vrot.lane.b32.xlu0 %v830, 32
  %v838 = vpop.permute.xlu0 %837
  %v851 = vcombine.low %v523, %v525
  %v852 = vcombine.low %v527, %v529
  %v853 = vcombine.low %v531, %v533
  %v854 = vcombine.low %v535, %v537
  %855 = vrot.lane.b32.xlu0 %v851, 36
  %v856 = vpop.permute.xlu0 %855
  %857 = vrot.lane.b32.xlu0 %v852, 36
  %v858 = vpop.permute.xlu0 %857
  %859 = vrot.lane.b32.xlu0 %v853, 36
  %v860 = vpop.permute.xlu0 %859
  %861 = vrot.lane.b32.xlu0 %v854, 36
  %v862 = vpop.permute.xlu0 %861
  %v875 = vcombine.low %v539, %v541
  %v876 = vcombine.low %v543, %v545
  %v877 = vcombine.low %v547, %v549
  %v878 = vcombine.low %v551, %v553
  %879 = vrot.lane.b32.xlu0 %v875, 40
  %v880 = vpop.permute.xlu0 %879
  %881 = vrot.lane.b32.xlu0 %v876, 40
  %v882 = vpop.permute.xlu0 %881
  %883 = vrot.lane.b32.xlu0 %v877, 40
  %v884 = vpop.permute.xlu0 %883
  %885 = vrot.lane.b32.xlu0 %v878, 40
  %v886 = vpop.permute.xlu0 %885
  %v899 = vcombine.low %v555, %v557
  %v900 = vcombine.low %v559, %v561
  %v901 = vcombine.low %v563, %v565
  %v902 = vcombine.low %v567, %v569
  %903 = vrot.lane.b32.xlu0 %v899, 44
  %v904 = vpop.permute.xlu0 %903
  %905 = vrot.lane.b32.xlu0 %v900, 44
  %v906 = vpop.permute.xlu0 %905
  %907 = vrot.lane.b32.xlu0 %v901, 44
  %v908 = vpop.permute.xlu0 %907
  %909 = vrot.lane.b32.xlu0 %v902, 44
  %v910 = vpop.permute.xlu0 %909
  %v923 = vcombine.low %v572, %v574
  %v924 = vcombine.low %v576, %v578
  %v925 = vcombine.low %v580, %v582
  %v926 = vcombine.low %v584, %v586
  %927 = vrot.lane.b32.xlu0 %v923, 48
  %v928 = vpop.permute.xlu0 %927
  %929 = vrot.lane.b32.xlu0 %v924, 48
  %v930 = vpop.permute.xlu0 %929
  %931 = vrot.lane.b32.xlu0 %v925, 48
  %v932 = vpop.permute.xlu0 %931
  %933 = vrot.lane.b32.xlu0 %v926, 48
  %v934 = vpop.permute.xlu0 %933
  %v947 = vcombine.low %v588, %v590
  %v948 = vcombine.low %v592, %v594
  %v949 = vcombine.low %v596, %v598
  %v950 = vcombine.low %v600, %v602
  %951 = vrot.lane.b32.xlu0 %v947, 52
  %v952 = vpop.permute.xlu0 %951
  %953 = vrot.lane.b32.xlu0 %v948, 52
  %v954 = vpop.permute.xlu0 %953
  %955 = vrot.lane.b32.xlu0 %v949, 52
  %v956 = vpop.permute.xlu0 %955
  %957 = vrot.lane.b32.xlu0 %v950, 52
  %v958 = vpop.permute.xlu0 %957
  %v971 = vcombine.low %v604, %v606
  %v972 = vcombine.low %v608, %v610
  %v973 = vcombine.low %v612, %v614
  %v974 = vcombine.low %v616, %v618
  %975 = vrot.lane.b32.xlu0 %v971, 56
  %v976 = vpop.permute.xlu0 %975
  %977 = vrot.lane.b32.xlu0 %v972, 56
  %v978 = vpop.permute.xlu0 %977
  %979 = vrot.lane.b32.xlu0 %v973, 56
  %v980 = vpop.permute.xlu0 %979
  %981 = vrot.lane.b32.xlu0 %v974, 56
  %v982 = vpop.permute.xlu0 %981
  %v995 = vcombine.low %v620, %v622
  %v996 = vcombine.low %v624, %v626
  %v997 = vcombine.low %v628, %v630
  %v998 = vcombine.low %v632, %v634
  %999 = vrot.lane.b32.xlu0 %v995, 60
  %v1000 = vpop.permute.xlu0 %999
  %1001 = vrot.lane.b32.xlu0 %v996, 60
  %v1002 = vpop.permute.xlu0 %1001
  %1003 = vrot.lane.b32.xlu0 %v997, 60
  %v1004 = vpop.permute.xlu0 %1003
  %1005 = vrot.lane.b32.xlu0 %v998, 60
  %v1006 = vpop.permute.xlu0 %1005
  %v1011 = vsel %vm305, %v643, %v664
  %v1012 = vsel %vm305, %v644, %v666
  %v1013 = vsel %vm305, %v645, %v668
  %v1014 = vsel %vm305, %v646, %v670
  %vm1015 = vcmask 64512
  %v1016 = vsel %vm1015, %v1011, %v688
  %v1017 = vsel %vm1015, %v1012, %v690
  %v1018 = vsel %vm1015, %v1013, %v692
  %v1019 = vsel %vm1015, %v1014, %v694
  %vm1020 = vcmask 97280
  %v1021 = vsel %vm1020, %v1016, %v712
  %v1022 = vsel %vm1020, %v1017, %v714
  %v1023 = vsel %vm1020, %v1018, %v716
  %v1024 = vsel %vm1020, %v1019, %v718
  %vm1025 = vcmask 130048
  %v1026 = vsel %vm1025, %v1021, %v736
  %v1027 = vsel %vm1025, %v1022, %v738
  %v1028 = vsel %vm1025, %v1023, %v740
  %v1029 = vsel %vm1025, %v1024, %v742
  %vm1030 = vcmask 162816
  %v1031 = vsel %vm1030, %v1026, %v760
  %v1032 = vsel %vm1030, %v1027, %v762
  %v1033 = vsel %vm1030, %v1028, %v764
  %v1034 = vsel %vm1030, %v1029, %v766
  %vm1035 = vcmask 195584
  %v1036 = vsel %vm1035, %v1031, %v784
  %v1037 = vsel %vm1035, %v1032, %v786
  %v1038 = vsel %vm1035, %v1033, %v788
  %v1039 = vsel %vm1035, %v1034, %v790
  %vm1040 = vcmask 228352
  %v1041 = vsel %vm1040, %v1036, %v808
  %v1042 = vsel %vm1040, %v1037, %v810
  %v1043 = vsel %vm1040, %v1038, %v812
  %v1044 = vsel %vm1040, %v1039, %v814
  %vm1045 = vcmask 261120
  %v1046 = vsel %vm1045, %v1041, %v832
  %v1047 = vsel %vm1045, %v1042, %v834
  %v1048 = vsel %vm1045, %v1043, %v836
  %v1049 = vsel %vm1045, %v1044, %v838
  %vm1050 = vcmask 293888
  %v1051 = vsel %vm1050, %v1046, %v856
  %v1052 = vsel %vm1050, %v1047, %v858
  %v1053 = vsel %vm1050, %v1048, %v860
  %v1054 = vsel %vm1050, %v1049, %v862
  %vm1055 = vcmask 326656
  %v1056 = vsel %vm1055, %v1051, %v880
  %v1057 = vsel %vm1055, %v1052, %v882
  %v1058 = vsel %vm1055, %v1053, %v884
  %v1059 = vsel %vm1055, %v1054, %v886
  %vm1060 = vcmask 359424
  %v1061 = vsel %vm1060, %v1056, %v904
  %v1062 = vsel %vm1060, %v1057, %v906
  %v1063 = vsel %vm1060, %v1058, %v908
  %v1064 = vsel %vm1060, %v1059, %v910
  %v1065 = vsel %vm63, %v1061, %v928
  %v1066 = vsel %vm63, %v1062, %v930
  %v1067 = vsel %vm63, %v1063, %v932
  %v1068 = vsel %vm63, %v1064, %v934
  %vm1069 = vcmask 424960
  %v1070 = vsel %vm1069, %v1065, %v952
  %v1071 = vsel %vm1069, %v1066, %v954
  %v1072 = vsel %vm1069, %v1067, %v956
  %v1073 = vsel %vm1069, %v1068, %v958
  %vm1074 = vcmask 457728
  %v1075 = vsel %vm1074, %v1070, %v976
  %v1076 = vsel %vm1074, %v1071, %v978
  %v1077 = vsel %vm1074, %v1072, %v980
  %v1078 = vsel %vm1074, %v1073, %v982
  %vm1079 = vcmask 490496
  %v1080 = vsel %vm1079, %v1075, %v1000
  %v1081 = vsel %vm1079, %v1076, %v1002
  %v1082 = vsel %vm1079, %v1077, %v1004
  %v1083 = vsel %vm1079, %v1078, %v1006
  %v1084 = vld [vmem:[%s3] sm:$0xff]
  %v1085 = vld [vmem:[%s3 + $0x8] sm:$0xff]
  %v1086 = vld [vmem:[%s3 + $0x10] sm:$0xff]
  %v1087 = vld [vmem:[%s3 + $0x18] sm:$0xff]
  %v1088 = vld [vmem:[%s3 + $0x20] sm:$0xff]
  %v1089 = vld [vmem:[%s3 + $0x28] sm:$0xff]
  %v1090 = vld [vmem:[%s3 + $0x30] sm:$0xff]
  %v1091 = vld [vmem:[%s3 + $0x38] sm:$0xff]
  %v1092 = vld [vmem:[%s4] sm:$0x1]
  %v1094 = vlaneseq
  %v1095 = vshrl.u32 %v1094, 7
  %v1096 = vsub.s32 0, %v1095
  %v1097 = vrot.slane %v1092, %v1096
  %vm1099 = vcmask 523264
  %v1101 = vsel %vm1099, %v1080, 0
  %v1104 = vsel %vm1099, %v1081, 0
  %v1107 = vsel %vm1099, %v1082, 0
  %v1110 = vsel %vm1099, %v1083, 0
  %1112 = vmatprep.subr.mxu0 0.0
  %1113 = vmatpush1.msra.mxu0 0.0
  %1114 = vmatprep.subr.mxu0 0.0
  %1115 = vmatpush1.msra.mxu0 0.0
  %1116 = vmatprep.subr.mxu0 0.0
  %1117 = vmatpush1.msra.mxu0 0.0
  %1118 = vmatprep.subr.mxu0 0.0
  %1119 = vmatpush1.msra.mxu0 0.0
  %1120 = vmatprep.subr.mxu0 0.0
  %1121 = vmatpush1.msra.mxu0 0.0
  %1122 = vmatprep.subr.mxu0 0.0
  %1123 = vmatpush1.msra.mxu0 0.0
  %1124 = vmatprep.subr.mxu0 0.0
  %1125 = vmatpush1.msra.mxu0 0.0
  %1126 = vmatprep.subr.mxu0 0.0
  %1127 = vmatpush1.msra.mxu0 0.0
  %1128 = vmatprep.subr.mxu0 0.0
  %1129 = vmatpush1.msra.mxu0 %v1091
  %1130 = vmatprep.subr.mxu0 0.0
  %1131 = vmatpush1.msra.mxu0 %v1090
  %1132 = vmatprep.subr.mxu0 0.0
  %1133 = vmatpush1.msra.mxu0 %v1089
  %1134 = vmatprep.subr.mxu0 0.0
  %1135 = vmatpush1.msra.mxu0 %v1088
  %1136 = vmatprep.subr.mxu0 0.0
  %1137 = vmatpush1.msra.mxu0 %v1087
  %1138 = vmatprep.subr.mxu0 0.0
  %1139 = vmatpush1.msra.mxu0 %v1086
  %1140 = vmatprep.subr.mxu0 0.0
  %1141 = vmatpush1.msra.mxu0 %v1085
  %1142 = vmatprep.subr.mxu0 0.0
  %1143 = vmatpush1.msra.mxu0 %v1084
  %1144 = vmatprep.subr.mxu0 0.0
  %1145 = vmatpush2.msra.mxu0 0.0
  %1146 = vmatprep.subr.mxu0 0.0
  %1147 = vmatpush2.msra.mxu0 0.0
  %1148 = vmatprep.subr.mxu0 0.0
  %1149 = vmatpush2.msra.mxu0 0.0
  %1150 = vmatprep.subr.mxu0 0.0
  %1151 = vmatpush2.msra.mxu0 0.0
  %1152 = vmatprep.subr.mxu0 0.0
  %1153 = vmatpush2.msra.mxu0 0.0
  %1154 = vmatprep.subr.mxu0 0.0
  %1155 = vmatpush2.msra.mxu0 0.0
  %1156 = vmatprep.subr.mxu0 0.0
  %1157 = vmatpush2.msra.mxu0 0.0
  %1158 = vmatprep.subr.mxu0 0.0
  %1159 = vmatpush2.msra.mxu0 0.0
  %1160 = vmatprep.subr.mxu0 0.0
  %1161 = vmatpush2.msra.mxu0 0.0
  %1162 = vmatprep.subr.mxu0 0.0
  %1163 = vmatpush2.msra.mxu0 0.0
  %1164 = vmatprep.subr.mxu0 0.0
  %1165 = vmatpush2.msra.mxu0 0.0
  %1166 = vmatprep.subr.mxu0 0.0
  %1167 = vmatpush2.msra.mxu0 0.0
  %1168 = vmatprep.subr.mxu0 0.0
  %1169 = vmatpush2.msra.mxu0 0.0
  %1170 = vmatprep.subr.mxu0 0.0
  %1171 = vmatpush2.msra.mxu0 0.0
  %1172 = vmatprep.subr.mxu0 0.0
  %1173 = vmatpush2.msra.mxu0 0.0
  %1174 = vmatprep.subr.mxu0 0.0
  %1175 = vmatpush2.msra.mxu0 0.0
  %1176 = vmatprep.mubr.f32.mxu0 0.0
  %1177 = vmatmul.mubr.f32.gmra.mxu0 %v1101
  %v1178 = vpop.f32.mrf.mxu0
  %v1179 = vadd.f32 %v1097, %v1178
  %v1180 = vpop.f32.mrf.mxu0
  %1181 = vmatprep.mubr.f32.mxu0 0.0
  %1182 = vmatmul.mubr.f32.gmra.mxu0 %v1104
  %v1183 = vpop.f32.mrf.mxu0
  %v1184 = vadd.f32 %v1097, %v1183
  %v1185 = vpop.f32.mrf.mxu0
  %1186 = vmatprep.mubr.f32.mxu0 0.0
  %1187 = vmatmul.mubr.f32.gmra.mxu0 %v1107
  %v1188 = vpop.f32.mrf.mxu0
  %v1189 = vadd.f32 %v1097, %v1188
  %v1190 = vpop.f32.mrf.mxu0
  %1191 = vmatprep.mubr.f32.mxu0 0.0
  %1192 = vmatmul.mubr.f32.gmra.mxu0 %v1110
  %v1193 = vpop.f32.mrf.mxu0
  %v1194 = vadd.f32 %v1097, %v1193
  %v1195 = vpop.f32.mrf.mxu0
  %1196 = vdwg.mxu0
  %vm1197 = vcmp.gt.f32.partialorder %v1179, 0.0
  %vm1198 = vcmp.gt.f32.partialorder %v1184, 0.0
  %vm1199 = vcmp.gt.f32.partialorder %v1189, 0.0
  %vm1200 = vcmp.gt.f32.partialorder %v1194, 0.0
  %v1201 = vmul.f32 %v1179, 0.01
  %v1202 = vmul.f32 %v1184, 0.01
  %v1203 = vmul.f32 %v1189, 0.01
  %v1204 = vmul.f32 %v1194, 0.01
  %v1205 = vsel %vm1197, %v1179, %v1201
  %v1206 = vsel %vm1198, %v1184, %v1202
  %v1207 = vsel %vm1199, %v1189, %v1203
  %v1208 = vsel %vm1200, %v1194, %v1204
  %1209 = vst.msk [vmem:[#allocation3] sm:$0xff] %vm1015, 0.0
  %vm1210 = vcmask 61440
  %1211 = vst.msk [vmem:[#allocation3 + $0x8] sm:$0x1f] %vm1210, 0.0
  %1212 = vst.msk [vmem:[#allocation3 + $0x60] sm:$0xff] %vm1015, 0.0
  %1213 = vst.msk [vmem:[#allocation3 + $0x68] sm:$0x1f] %vm1210, 0.0
  %s1214 = scalar_lea.vmem [#allocation3], 80
  %1215 = vst.msk [vmem:[%s1214] sm:$0xff] %vm1015, 0.0
  %1216 = vst.msk [vmem:[%s1214 + $0x8] sm:$0x1f] %vm1210, 0.0
  %1217 = vst.msk [vmem:[%s1214 + $0x60] sm:$0xff] %vm1015, 0.0
  %1218 = vst.msk [vmem:[%s1214 + $0x68] sm:$0x1f] %vm1210, 0.0
  %vm1219 = vcmask 57344
  %1220 = vst.msk [vmem:[#allocation3 + $0x7] sm:$0x1] %vm1219, 0.0
  %1221 = vst.msk [vmem:[#allocation3 + $0x17] sm:$0x1] %vm1219, 0.0
  %1222 = vst.msk [vmem:[#allocation3 + $0x27] sm:$0x1] %vm1219, 0.0
  %1223 = vst.msk [vmem:[#allocation3 + $0x37] sm:$0x1] %vm1219, 0.0
  %1224 = vst.msk [vmem:[#allocation3 + $0x47] sm:$0x1] %vm1219, 0.0
  %1225 = vst.msk [vmem:[#allocation3 + $0x57] sm:$0x1] %vm1219, 0.0
  %1226 = vst.msk [vmem:[#allocation3 + $0x67] sm:$0x1] %vm1219, 0.0
  %1227 = vst.msk [vmem:[#allocation3 + $0x77] sm:$0x1] %vm1219, 0.0
  %1228 = vst.msk [vmem:[#allocation3 + $0x87] sm:$0x1] %vm1219, 0.0
  %1229 = vst.msk [vmem:[#allocation3 + $0x97] sm:$0x1] %vm1219, 0.0
  %1230 = vst.msk [vmem:[#allocation3 + $0xa7] sm:$0x1] %vm1219, 0.0
  %1231 = vst.msk [vmem:[#allocation3 + $0xb7] sm:$0x1] %vm1219, 0.0
  %1232 = vst.msk [vmem:[#allocation3 + $0xc] sm:$0x1] %vm1219, 0.0
  %1233 = vst.msk [vmem:[#allocation3 + $0x1c] sm:$0x1] %vm1219, 0.0
  %1234 = vst.msk [vmem:[#allocation3 + $0x2c] sm:$0x1] %vm1219, 0.0
  %1235 = vst.msk [vmem:[#allocation3 + $0x3c] sm:$0x1] %vm1219, 0.0
  %1236 = vst.msk [vmem:[#allocation3 + $0x4c] sm:$0x1] %vm1219, 0.0
  %1237 = vst.msk [vmem:[#allocation3 + $0x5c] sm:$0x1] %vm1219, 0.0
  %1238 = vst.msk [vmem:[#allocation3 + $0x6c] sm:$0x1] %vm1219, 0.0
  %1239 = vst.msk [vmem:[#allocation3 + $0x7c] sm:$0x1] %vm1219, 0.0
  %1240 = vst.msk [vmem:[#allocation3 + $0x8c] sm:$0x1] %vm1219, 0.0
  %1241 = vst.msk [vmem:[#allocation3 + $0x9c] sm:$0x1] %vm1219, 0.0
  %1242 = vst.msk [vmem:[#allocation3 + $0xac] sm:$0x1] %vm1219, 0.0
  %1243 = vst.msk [vmem:[#allocation3 + $0xbc] sm:$0x1] %vm1219, 0.0
  %v1248 = vcombine.high %v1205, %v1205
  %v1249 = vcombine.high %v1206, %v1206
  %v1250 = vcombine.high %v1207, %v1207
  %v1251 = vcombine.high %v1208, %v1208
  %s1256 = scalar_lea.vmem [#allocation3], 16
  %vm1257 = vcmask 60416
  %1258 = vst.msk [vmem:[%s1256 + $0x8] sm:$0xf] %vm1257, %v1205
  %1259 = vst.msk [vmem:[%s1256 + $0x18] sm:$0xf] %vm1257, %v1248
  %1260 = vst.msk [vmem:[%s1256 + $0x28] sm:$0xf] %vm1257, %v1206
  %1261 = vst.msk [vmem:[%s1256 + $0x38] sm:$0xf] %vm1257, %v1249
  %1262 = vst.msk [vmem:[%s1256 + $0x68] sm:$0xf] %vm1257, %v1207
  %1263 = vst.msk [vmem:[%s1256 + $0x78] sm:$0xf] %vm1257, %v1250
  %1264 = vst.msk [vmem:[%s1256 + $0x88] sm:$0xf] %vm1257, %v1208
  %1265 = vst.msk [vmem:[%s1256 + $0x98] sm:$0xf] %vm1257, %v1251
  %s1266 = scalar_lea.vmem [#allocation3], 7
  %v1267 = vld [vmem:[%s1266] ss:$2 sm:$0x3]
  %s1268 = scalar_lea.vmem [#allocation3], 39
  %v1269 = vld [vmem:[%s1268] ss:$2 sm:$0x3]
  %s1270 = scalar_lea.vmem [#allocation3], 103
  %v1271 = vld [vmem:[%s1270] ss:$2 sm:$0x3]
  %s1272 = scalar_lea.vmem [#allocation3], 135
  %v1273 = vld [vmem:[%s1272] ss:$2 sm:$0x3]
  %s1274 = scalar_lea.vmem [#allocation3], 8
  %v1275 = vld [vmem:[%s1274] ss:$2 sm:$0x3]
  %s1276 = scalar_lea.vmem [#allocation3], 40
  %v1277 = vld [vmem:[%s1276] ss:$2 sm:$0x3]
  %s1278 = scalar_lea.vmem [#allocation3], 104
  %v1279 = vld [vmem:[%s1278] ss:$2 sm:$0x3]
  %s1280 = scalar_lea.vmem [#allocation3], 136
  %v1281 = vld [vmem:[%s1280] ss:$2 sm:$0x3]
  %s1282 = scalar_lea.vmem [#allocation3], 9
  %v1283 = vld [vmem:[%s1282] ss:$2 sm:$0x3]
  %s1284 = scalar_lea.vmem [#allocation3], 41
  %v1285 = vld [vmem:[%s1284] ss:$2 sm:$0x3]
  %s1286 = scalar_lea.vmem [#allocation3], 105
  %v1287 = vld [vmem:[%s1286] ss:$2 sm:$0x3]
  %s1288 = scalar_lea.vmem [#allocation3], 137
  %v1289 = vld [vmem:[%s1288] ss:$2 sm:$0x3]
  %s1290 = scalar_lea.vmem [#allocation3], 10
  %v1291 = vld [vmem:[%s1290] ss:$2 sm:$0x3]
  %s1292 = scalar_lea.vmem [#allocation3], 42
  %v1293 = vld [vmem:[%s1292] ss:$2 sm:$0x3]
  %s1294 = scalar_lea.vmem [#allocation3], 106
  %v1295 = vld [vmem:[%s1294] ss:$2 sm:$0x3]
  %s1296 = scalar_lea.vmem [#allocation3], 138
  %v1297 = vld [vmem:[%s1296] ss:$2 sm:$0x3]
  %s1298 = scalar_lea.vmem %s1256, 7 [#allocation3]
  %v1299 = vld [vmem:[%s1298] ss:$2 sm:$0x3]
  %s1300 = scalar_lea.vmem %s1256, 39 [#allocation3]
  %v1301 = vld [vmem:[%s1300] ss:$2 sm:$0x3]
  %s1302 = scalar_lea.vmem %s1256, 103 [#allocation3]
  %v1303 = vld [vmem:[%s1302] ss:$2 sm:$0x3]
  %s1304 = scalar_lea.vmem %s1256, 135 [#allocation3]
  %v1305 = vld [vmem:[%s1304] ss:$2 sm:$0x3]
  %s1306 = scalar_lea.vmem %s1256, 8 [#allocation3]
  %v1307 = vld [vmem:[%s1306] ss:$2 sm:$0x3]
  %s1308 = scalar_lea.vmem %s1256, 40 [#allocation3]
  %v1309 = vld [vmem:[%s1308] ss:$2 sm:$0x3]
  %s1310 = scalar_lea.vmem %s1256, 104 [#allocation3]
  %v1311 = vld [vmem:[%s1310] ss:$2 sm:$0x3]
  %s1312 = scalar_lea.vmem %s1256, 136 [#allocation3]
  %v1313 = vld [vmem:[%s1312] ss:$2 sm:$0x3]
  %s1314 = scalar_lea.vmem %s1256, 9 [#allocation3]
  %v1315 = vld [vmem:[%s1314] ss:$2 sm:$0x3]
  %s1316 = scalar_lea.vmem %s1256, 41 [#allocation3]
  %v1317 = vld [vmem:[%s1316] ss:$2 sm:$0x3]
  %s1318 = scalar_lea.vmem %s1256, 105 [#allocation3]
  %v1319 = vld [vmem:[%s1318] ss:$2 sm:$0x3]
  %s1320 = scalar_lea.vmem %s1256, 137 [#allocation3]
  %v1321 = vld [vmem:[%s1320] ss:$2 sm:$0x3]
  %s1322 = scalar_lea.vmem %s1256, 10 [#allocation3]
  %v1323 = vld [vmem:[%s1322] ss:$2 sm:$0x3]
  %s1324 = scalar_lea.vmem %s1256, 42 [#allocation3]
  %v1325 = vld [vmem:[%s1324] ss:$2 sm:$0x3]
  %s1326 = scalar_lea.vmem %s1256, 106 [#allocation3]
  %v1327 = vld [vmem:[%s1326] ss:$2 sm:$0x3]
  %s1328 = scalar_lea.vmem %s1256, 138 [#allocation3]
  %v1329 = vld [vmem:[%s1328] ss:$2 sm:$0x3]
  %s1330 = scalar_lea.vmem [#allocation3], 32
  %s1331 = scalar_lea.vmem %s1330, 7 [#allocation3]
  %v1332 = vld [vmem:[%s1331] ss:$2 sm:$0x3]
  %s1333 = scalar_lea.vmem %s1330, 39 [#allocation3]
  %v1334 = vld [vmem:[%s1333] ss:$2 sm:$0x3]
  %s1335 = scalar_lea.vmem %s1330, 103 [#allocation3]
  %v1336 = vld [vmem:[%s1335] ss:$2 sm:$0x3]
  %s1337 = scalar_lea.vmem %s1330, 135 [#allocation3]
  %v1338 = vld [vmem:[%s1337] ss:$2 sm:$0x3]
  %s1339 = scalar_lea.vmem %s1330, 8 [#allocation3]
  %v1340 = vld [vmem:[%s1339] ss:$2 sm:$0x3]
  %s1341 = scalar_lea.vmem %s1330, 40 [#allocation3]
  %v1342 = vld [vmem:[%s1341] ss:$2 sm:$0x3]
  %s1343 = scalar_lea.vmem %s1330, 104 [#allocation3]
  %v1344 = vld [vmem:[%s1343] ss:$2 sm:$0x3]
  %s1345 = scalar_lea.vmem %s1330, 136 [#allocation3]
  %v1346 = vld [vmem:[%s1345] ss:$2 sm:$0x3]
  %s1347 = scalar_lea.vmem %s1330, 9 [#allocation3]
  %v1348 = vld [vmem:[%s1347] ss:$2 sm:$0x3]
  %s1349 = scalar_lea.vmem %s1330, 41 [#allocation3]
  %v1350 = vld [vmem:[%s1349] ss:$2 sm:$0x3]
  %s1351 = scalar_lea.vmem %s1330, 105 [#allocation3]
  %v1352 = vld [vmem:[%s1351] ss:$2 sm:$0x3]
  %s1353 = scalar_lea.vmem %s1330, 137 [#allocation3]
  %v1354 = vld [vmem:[%s1353] ss:$2 sm:$0x3]
  %s1355 = scalar_lea.vmem %s1330, 10 [#allocation3]
  %v1356 = vld [vmem:[%s1355] ss:$2 sm:$0x3]
  %s1357 = scalar_lea.vmem %s1330, 42 [#allocation3]
  %v1358 = vld [vmem:[%s1357] ss:$2 sm:$0x3]
  %s1359 = scalar_lea.vmem %s1330, 106 [#allocation3]
  %v1360 = vld [vmem:[%s1359] ss:$2 sm:$0x3]
  %s1361 = scalar_lea.vmem %s1330, 138 [#allocation3]
  %v1362 = vld [vmem:[%s1361] ss:$2 sm:$0x3]
  %s1363 = scalar_lea.vmem [#allocation3], 48
  %s1364 = scalar_lea.vmem %s1363, 7 [#allocation3]
  %v1365 = vld [vmem:[%s1364] ss:$2 sm:$0x3]
  %s1366 = scalar_lea.vmem %s1363, 39 [#allocation3]
  %v1367 = vld [vmem:[%s1366] ss:$2 sm:$0x3]
  %s1368 = scalar_lea.vmem %s1363, 103 [#allocation3]
  %v1369 = vld [vmem:[%s1368] ss:$2 sm:$0x3]
  %s1370 = scalar_lea.vmem %s1363, 135 [#allocation3]
  %v1371 = vld [vmem:[%s1370] ss:$2 sm:$0x3]
  %s1372 = scalar_lea.vmem %s1363, 8 [#allocation3]
  %v1373 = vld [vmem:[%s1372] ss:$2 sm:$0x3]
  %s1374 = scalar_lea.vmem %s1363, 40 [#allocation3]
  %v1375 = vld [vmem:[%s1374] ss:$2 sm:$0x3]
  %s1376 = scalar_lea.vmem %s1363, 104 [#allocation3]
  %v1377 = vld [vmem:[%s1376] ss:$2 sm:$0x3]
  %s1378 = scalar_lea.vmem %s1363, 136 [#allocation3]
  %v1379 = vld [vmem:[%s1378] ss:$2 sm:$0x3]
  %s1380 = scalar_lea.vmem %s1363, 9 [#allocation3]
  %v1381 = vld [vmem:[%s1380] ss:$2 sm:$0x3]
  %s1382 = scalar_lea.vmem %s1363, 41 [#allocation3]
  %v1383 = vld [vmem:[%s1382] ss:$2 sm:$0x3]
  %s1384 = scalar_lea.vmem %s1363, 105 [#allocation3]
  %v1385 = vld [vmem:[%s1384] ss:$2 sm:$0x3]
  %s1386 = scalar_lea.vmem %s1363, 137 [#allocation3]
  %v1387 = vld [vmem:[%s1386] ss:$2 sm:$0x3]
  %s1388 = scalar_lea.vmem %s1363, 10 [#allocation3]
  %v1389 = vld [vmem:[%s1388] ss:$2 sm:$0x3]
  %s1390 = scalar_lea.vmem %s1363, 42 [#allocation3]
  %v1391 = vld [vmem:[%s1390] ss:$2 sm:$0x3]
  %s1392 = scalar_lea.vmem %s1363, 106 [#allocation3]
  %v1393 = vld [vmem:[%s1392] ss:$2 sm:$0x3]
  %s1394 = scalar_lea.vmem %s1363, 138 [#allocation3]
  %v1395 = vld [vmem:[%s1394] ss:$2 sm:$0x3]
  %v1400 = vcombine.low %v1267, %v1269
  %v1401 = vcombine.low %v1271, %v1273
  %v1403 = vunpack.c.l.s4 1983009808
  %v1404 = vunpack.c.0.s8 %v1403
  %v1405 = vlaneseq
  %v1406 = vshrl.u32 %v1405, 7
  %v1407 = vsub.s32 %v1404, %v1406
  %v1408 = vrot.slane %v1400, %v1407
  %v1410 = vunpack.c.l.s4 1983009808
  %v1411 = vunpack.c.0.s8 %v1410
  %v1412 = vlaneseq
  %v1413 = vshrl.u32 %v1412, 7
  %v1414 = vsub.s32 %v1411, %v1413
  %v1415 = vrot.slane %v1401, %v1414
  %v1416 = vcombine.low %v1408, %v1415
  %v1422 = vcombine.low %v1275, %v1277
  %v1423 = vcombine.low %v1279, %v1281
  %v1425 = vunpack.c.l.s4 1983009808
  %v1426 = vunpack.c.0.s8 %v1425
  %v1427 = vlaneseq
  %v1428 = vshrl.u32 %v1427, 7
  %v1429 = vsub.s32 %v1426, %v1428
  %v1430 = vrot.slane %v1422, %v1429
  %v1432 = vunpack.c.l.s4 1983009808
  %v1433 = vunpack.c.0.s8 %v1432
  %v1434 = vlaneseq
  %v1435 = vshrl.u32 %v1434, 7
  %v1436 = vsub.s32 %v1433, %v1435
  %v1437 = vrot.slane %v1423, %v1436
  %v1438 = vcombine.low %v1430, %v1437
  %1439 = vrot.lane.b32.xlu0 %v1438, 8
  %v1440 = vpop.permute.xlu0 %1439
  %v1446 = vcombine.low %v1283, %v1285
  %v1447 = vcombine.low %v1287, %v1289
  %v1449 = vunpack.c.l.s4 1983009808
  %v1450 = vunpack.c.0.s8 %v1449
  %v1451 = vlaneseq
  %v1452 = vshrl.u32 %v1451, 7
  %v1453 = vsub.s32 %v1450, %v1452
  %v1454 = vrot.slane %v1446, %v1453
  %v1456 = vunpack.c.l.s4 1983009808
  %v1457 = vunpack.c.0.s8 %v1456
  %v1458 = vlaneseq
  %v1459 = vshrl.u32 %v1458, 7
  %v1460 = vsub.s32 %v1457, %v1459
  %v1461 = vrot.slane %v1447, %v1460
  %v1462 = vcombine.low %v1454, %v1461
  %1463 = vrot.lane.b32.xlu0 %v1462, 16
  %v1464 = vpop.permute.xlu0 %1463
  %v1470 = vcombine.low %v1291, %v1293
  %v1471 = vcombine.low %v1295, %v1297
  %v1473 = vunpack.c.l.s4 1983009808
  %v1474 = vunpack.c.0.s8 %v1473
  %v1475 = vlaneseq
  %v1476 = vshrl.u32 %v1475, 7
  %v1477 = vsub.s32 %v1474, %v1476
  %v1478 = vrot.slane %v1470, %v1477
  %v1480 = vunpack.c.l.s4 1983009808
  %v1481 = vunpack.c.0.s8 %v1480
  %v1482 = vlaneseq
  %v1483 = vshrl.u32 %v1482, 7
  %v1484 = vsub.s32 %v1481, %v1483
  %v1485 = vrot.slane %v1471, %v1484
  %v1486 = vcombine.low %v1478, %v1485
  %1487 = vrot.lane.b32.xlu0 %v1486, 24
  %v1488 = vpop.permute.xlu0 %1487
  %v1494 = vcombine.low %v1299, %v1301
  %v1495 = vcombine.low %v1303, %v1305
  %v1497 = vunpack.c.l.s4 1983009808
  %v1498 = vunpack.c.0.s8 %v1497
  %v1499 = vlaneseq
  %v1500 = vshrl.u32 %v1499, 7
  %v1501 = vsub.s32 %v1498, %v1500
  %v1502 = vrot.slane %v1494, %v1501
  %v1504 = vunpack.c.l.s4 1983009808
  %v1505 = vunpack.c.0.s8 %v1504
  %v1506 = vlaneseq
  %v1507 = vshrl.u32 %v1506, 7
  %v1508 = vsub.s32 %v1505, %v1507
  %v1509 = vrot.slane %v1495, %v1508
  %v1510 = vcombine.low %v1502, %v1509
  %1511 = vrot.lane.b32.xlu0 %v1510, 32
  %v1512 = vpop.permute.xlu0 %1511
  %v1518 = vcombine.low %v1307, %v1309
  %v1519 = vcombine.low %v1311, %v1313
  %v1521 = vunpack.c.l.s4 1983009808
  %v1522 = vunpack.c.0.s8 %v1521
  %v1523 = vlaneseq
  %v1524 = vshrl.u32 %v1523, 7
  %v1525 = vsub.s32 %v1522, %v1524
  %v1526 = vrot.slane %v1518, %v1525
  %v1528 = vunpack.c.l.s4 1983009808
  %v1529 = vunpack.c.0.s8 %v1528
  %v1530 = vlaneseq
  %v1531 = vshrl.u32 %v1530, 7
  %v1532 = vsub.s32 %v1529, %v1531
  %v1533 = vrot.slane %v1519, %v1532
  %v1534 = vcombine.low %v1526, %v1533
  %1535 = vrot.lane.b32.xlu0 %v1534, 40
  %v1536 = vpop.permute.xlu0 %1535
  %v1542 = vcombine.low %v1315, %v1317
  %v1543 = vcombine.low %v1319, %v1321
  %v1545 = vunpack.c.l.s4 1983009808
  %v1546 = vunpack.c.0.s8 %v1545
  %v1547 = vlaneseq
  %v1548 = vshrl.u32 %v1547, 7
  %v1549 = vsub.s32 %v1546, %v1548
  %v1550 = vrot.slane %v1542, %v1549
  %v1552 = vunpack.c.l.s4 1983009808
  %v1553 = vunpack.c.0.s8 %v1552
  %v1554 = vlaneseq
  %v1555 = vshrl.u32 %v1554, 7
  %v1556 = vsub.s32 %v1553, %v1555
  %v1557 = vrot.slane %v1543, %v1556
  %v1558 = vcombine.low %v1550, %v1557
  %1559 = vrot.lane.b32.xlu0 %v1558, 48
  %v1560 = vpop.permute.xlu0 %1559
  %v1566 = vcombine.low %v1323, %v1325
  %v1567 = vcombine.low %v1327, %v1329
  %v1569 = vunpack.c.l.s4 1983009808
  %v1570 = vunpack.c.0.s8 %v1569
  %v1571 = vlaneseq
  %v1572 = vshrl.u32 %v1571, 7
  %v1573 = vsub.s32 %v1570, %v1572
  %v1574 = vrot.slane %v1566, %v1573
  %v1576 = vunpack.c.l.s4 1983009808
  %v1577 = vunpack.c.0.s8 %v1576
  %v1578 = vlaneseq
  %v1579 = vshrl.u32 %v1578, 7
  %v1580 = vsub.s32 %v1577, %v1579
  %v1581 = vrot.slane %v1567, %v1580
  %v1582 = vcombine.low %v1574, %v1581
  %1583 = vrot.lane.b32.xlu0 %v1582, 56
  %v1584 = vpop.permute.xlu0 %1583
  %v1590 = vcombine.low %v1332, %v1334
  %v1591 = vcombine.low %v1336, %v1338
  %v1593 = vunpack.c.l.s4 1983009808
  %v1594 = vunpack.c.0.s8 %v1593
  %v1595 = vlaneseq
  %v1596 = vshrl.u32 %v1595, 7
  %v1597 = vsub.s32 %v1594, %v1596
  %v1598 = vrot.slane %v1590, %v1597
  %v1600 = vunpack.c.l.s4 1983009808
  %v1601 = vunpack.c.0.s8 %v1600
  %v1602 = vlaneseq
  %v1603 = vshrl.u32 %v1602, 7
  %v1604 = vsub.s32 %v1601, %v1603
  %v1605 = vrot.slane %v1591, %v1604
  %v1606 = vcombine.low %v1598, %v1605
  %1607 = vrot.lane.b32.xlu0 %v1606, 64
  %v1608 = vpop.permute.xlu0 %1607
  %v1614 = vcombine.low %v1340, %v1342
  %v1615 = vcombine.low %v1344, %v1346
  %v1617 = vunpack.c.l.s4 1983009808
  %v1618 = vunpack.c.0.s8 %v1617
  %v1619 = vlaneseq
  %v1620 = vshrl.u32 %v1619, 7
  %v1621 = vsub.s32 %v1618, %v1620
  %v1622 = vrot.slane %v1614, %v1621
  %v1624 = vunpack.c.l.s4 1983009808
  %v1625 = vunpack.c.0.s8 %v1624
  %v1626 = vlaneseq
  %v1627 = vshrl.u32 %v1626, 7
  %v1628 = vsub.s32 %v1625, %v1627
  %v1629 = vrot.slane %v1615, %v1628
  %v1630 = vcombine.low %v1622, %v1629
  %1631 = vrot.lane.b32.xlu0 %v1630, 72
  %v1632 = vpop.permute.xlu0 %1631
  %v1638 = vcombine.low %v1348, %v1350
  %v1639 = vcombine.low %v1352, %v1354
  %v1641 = vunpack.c.l.s4 1983009808
  %v1642 = vunpack.c.0.s8 %v1641
  %v1643 = vlaneseq
  %v1644 = vshrl.u32 %v1643, 7
  %v1645 = vsub.s32 %v1642, %v1644
  %v1646 = vrot.slane %v1638, %v1645
  %v1648 = vunpack.c.l.s4 1983009808
  %v1649 = vunpack.c.0.s8 %v1648
  %v1650 = vlaneseq
  %v1651 = vshrl.u32 %v1650, 7
  %v1652 = vsub.s32 %v1649, %v1651
  %v1653 = vrot.slane %v1639, %v1652
  %v1654 = vcombine.low %v1646, %v1653
  %1655 = vrot.lane.b32.xlu0 %v1654, 80
  %v1656 = vpop.permute.xlu0 %1655
  %v1662 = vcombine.low %v1356, %v1358
  %v1663 = vcombine.low %v1360, %v1362
  %v1665 = vunpack.c.l.s4 1983009808
  %v1666 = vunpack.c.0.s8 %v1665
  %v1667 = vlaneseq
  %v1668 = vshrl.u32 %v1667, 7
  %v1669 = vsub.s32 %v1666, %v1668
  %v1670 = vrot.slane %v1662, %v1669
  %v1672 = vunpack.c.l.s4 1983009808
  %v1673 = vunpack.c.0.s8 %v1672
  %v1674 = vlaneseq
  %v1675 = vshrl.u32 %v1674, 7
  %v1676 = vsub.s32 %v1673, %v1675
  %v1677 = vrot.slane %v1663, %v1676
  %v1678 = vcombine.low %v1670, %v1677
  %1679 = vrot.lane.b32.xlu0 %v1678, 88
  %v1680 = vpop.permute.xlu0 %1679
  %v1686 = vcombine.low %v1365, %v1367
  %v1687 = vcombine.low %v1369, %v1371
  %v1689 = vunpack.c.l.s4 1983009808
  %v1690 = vunpack.c.0.s8 %v1689
  %v1691 = vlaneseq
  %v1692 = vshrl.u32 %v1691, 7
  %v1693 = vsub.s32 %v1690, %v1692
  %v1694 = vrot.slane %v1686, %v1693
  %v1696 = vunpack.c.l.s4 1983009808
  %v1697 = vunpack.c.0.s8 %v1696
  %v1698 = vlaneseq
  %v1699 = vshrl.u32 %v1698, 7
  %v1700 = vsub.s32 %v1697, %v1699
  %v1701 = vrot.slane %v1687, %v1700
  %v1702 = vcombine.low %v1694, %v1701
  %1703 = vrot.lane.b32.xlu0 %v1702, 96
  %v1704 = vpop.permute.xlu0 %1703
  %v1710 = vcombine.low %v1373, %v1375
  %v1711 = vcombine.low %v1377, %v1379
  %v1713 = vunpack.c.l.s4 1983009808
  %v1714 = vunpack.c.0.s8 %v1713
  %v1715 = vlaneseq
  %v1716 = vshrl.u32 %v1715, 7
  %v1717 = vsub.s32 %v1714, %v1716
  %v1718 = vrot.slane %v1710, %v1717
  %v1720 = vunpack.c.l.s4 1983009808
  %v1721 = vunpack.c.0.s8 %v1720
  %v1722 = vlaneseq
  %v1723 = vshrl.u32 %v1722, 7
  %v1724 = vsub.s32 %v1721, %v1723
  %v1725 = vrot.slane %v1711, %v1724
  %v1726 = vcombine.low %v1718, %v1725
  %1727 = vrot.lane.b32.xlu0 %v1726, 104
  %v1728 = vpop.permute.xlu0 %1727
  %v1734 = vcombine.low %v1381, %v1383
  %v1735 = vcombine.low %v1385, %v1387
  %v1737 = vunpack.c.l.s4 1983009808
  %v1738 = vunpack.c.0.s8 %v1737
  %v1739 = vlaneseq
  %v1740 = vshrl.u32 %v1739, 7
  %v1741 = vsub.s32 %v1738, %v1740
  %v1742 = vrot.slane %v1734, %v1741
  %v1744 = vunpack.c.l.s4 1983009808
  %v1745 = vunpack.c.0.s8 %v1744
  %v1746 = vlaneseq
  %v1747 = vshrl.u32 %v1746, 7
  %v1748 = vsub.s32 %v1745, %v1747
  %v1749 = vrot.slane %v1735, %v1748
  %v1750 = vcombine.low %v1742, %v1749
  %1751 = vrot.lane.b32.xlu0 %v1750, 112
  %v1752 = vpop.permute.xlu0 %1751
  %v1758 = vcombine.low %v1389, %v1391
  %v1759 = vcombine.low %v1393, %v1395
  %v1761 = vunpack.c.l.s4 1983009808
  %v1762 = vunpack.c.0.s8 %v1761
  %v1763 = vlaneseq
  %v1764 = vshrl.u32 %v1763, 7
  %v1765 = vsub.s32 %v1762, %v1764
  %v1766 = vrot.slane %v1758, %v1765
  %v1768 = vunpack.c.l.s4 1983009808
  %v1769 = vunpack.c.0.s8 %v1768
  %v1770 = vlaneseq
  %v1771 = vshrl.u32 %v1770, 7
  %v1772 = vsub.s32 %v1769, %v1771
  %v1773 = vrot.slane %v1759, %v1772
  %v1774 = vcombine.low %v1766, %v1773
  %1775 = vrot.lane.b32.xlu0 %v1774, 120
  %v1776 = vpop.permute.xlu0 %1775
  %v1778 = vsel %vm1015, %v1416, %v1440
  %v1779 = vsel %vm1025, %v1778, %v1464
  %v1780 = vsel %vm1035, %v1779, %v1488
  %v1781 = vsel %vm1045, %v1780, %v1512
  %v1782 = vsel %vm1055, %v1781, %v1536
  %v1783 = vsel %vm63, %v1782, %v1560
  %v1784 = vsel %vm1074, %v1783, %v1584
  %v1785 = vsel %vm1099, %v1784, %v1608
  %vm1786 = vcmask 588800
  %v1787 = vsel %vm1786, %v1785, %v1632
  %vm1788 = vcmask 654336
  %v1789 = vsel %vm1788, %v1787, %v1656
  %vm1790 = vcmask 719872
  %v1791 = vsel %vm1790, %v1789, %v1680
  %vm1792 = vcmask 785408
  %v1793 = vsel %vm1792, %v1791, %v1704
  %vm1794 = vcmask 850944
  %v1795 = vsel %vm1794, %v1793, %v1728
  %vm1796 = vcmask 916480
  %v1797 = vsel %vm1796, %v1795, %v1752
  %vm1798 = vcmask 982016
  %v1799 = vsel %vm1798, %v1797, %v1776
  %v1800 = vld [vmem:[%s5] sm:$0xff]
  %v1801 = vld [vmem:[%s5 + $0x8] sm:$0xff]
  %v1802 = vld [vmem:[%s5 + $0x10] sm:$0xff]
  %v1803 = vld [vmem:[%s5 + $0x18] sm:$0xff]
  %v1804 = vld [vmem:[%s5 + $0x20] sm:$0xff]
  %v1805 = vld [vmem:[%s5 + $0x28] sm:$0xff]
  %v1806 = vld [vmem:[%s5 + $0x30] sm:$0xff]
  %v1807 = vld [vmem:[%s5 + $0x38] sm:$0xff]
  %v1808 = vld [vmem:[%s5 + $0x40] sm:$0xff]
  %v1809 = vld [vmem:[%s5 + $0x48] sm:$0xff]
  %v1810 = vld [vmem:[%s5 + $0x50] sm:$0xff]
  %v1811 = vld [vmem:[%s5 + $0x58] sm:$0xff]
  %v1812 = vld [vmem:[%s5 + $0x60] sm:$0xff]
  %v1813 = vld [vmem:[%s5 + $0x68] sm:$0xff]
  %v1814 = vld [vmem:[%s5 + $0x70] sm:$0xff]
  %v1815 = vld [vmem:[%s5 + $0x78] sm:$0xff]
  %v1816 = vld [vmem:[%s6] sm:$0x1]
  %v1818 = vlaneseq
  %v1819 = vshrl.u32 %v1818, 7
  %v1820 = vsub.s32 0, %v1819
  %v1821 = vrot.slane %v1816, %v1820
  %1823 = vmatprep.subr.mxu0 0.0
  %1824 = vmatpush1.msra.mxu0 %v1815
  %1825 = vmatprep.subr.mxu0 0.0
  %1826 = vmatpush1.msra.mxu0 %v1814
  %1827 = vmatprep.subr.mxu0 0.0
  %1828 = vmatpush1.msra.mxu0 %v1813
  %1829 = vmatprep.subr.mxu0 0.0
  %1830 = vmatpush1.msra.mxu0 %v1812
  %1831 = vmatprep.subr.mxu0 0.0
  %1832 = vmatpush1.msra.mxu0 %v1811
  %1833 = vmatprep.subr.mxu0 0.0
  %1834 = vmatpush1.msra.mxu0 %v1810
  %1835 = vmatprep.subr.mxu0 0.0
  %1836 = vmatpush1.msra.mxu0 %v1809
  %1837 = vmatprep.subr.mxu0 0.0
  %1838 = vmatpush1.msra.mxu0 %v1808
  %1839 = vmatprep.subr.mxu0 0.0
  %1840 = vmatpush1.msra.mxu0 %v1807
  %1841 = vmatprep.subr.mxu0 0.0
  %1842 = vmatpush1.msra.mxu0 %v1806
  %1843 = vmatprep.subr.mxu0 0.0
  %1844 = vmatpush1.msra.mxu0 %v1805
  %1845 = vmatprep.subr.mxu0 0.0
  %1846 = vmatpush1.msra.mxu0 %v1804
  %1847 = vmatprep.subr.mxu0 0.0
  %1848 = vmatpush1.msra.mxu0 %v1803
  %1849 = vmatprep.subr.mxu0 0.0
  %1850 = vmatpush1.msra.mxu0 %v1802
  %1851 = vmatprep.subr.mxu0 0.0
  %1852 = vmatpush1.msra.mxu0 %v1801
  %1853 = vmatprep.subr.mxu0 0.0
  %1854 = vmatpush1.msra.mxu0 %v1800
  %1855 = vmatprep.subr.mxu0 0.0
  %1856 = vmatpush2.msra.mxu0 0.0
  %1857 = vmatprep.subr.mxu0 0.0
  %1858 = vmatpush2.msra.mxu0 0.0
  %1859 = vmatprep.subr.mxu0 0.0
  %1860 = vmatpush2.msra.mxu0 0.0
  %1861 = vmatprep.subr.mxu0 0.0
  %1862 = vmatpush2.msra.mxu0 0.0
  %1863 = vmatprep.subr.mxu0 0.0
  %1864 = vmatpush2.msra.mxu0 0.0
  %1865 = vmatprep.subr.mxu0 0.0
  %1866 = vmatpush2.msra.mxu0 0.0
  %1867 = vmatprep.subr.mxu0 0.0
  %1868 = vmatpush2.msra.mxu0 0.0
  %1869 = vmatprep.subr.mxu0 0.0
  %1870 = vmatpush2.msra.mxu0 0.0
  %1871 = vmatprep.subr.mxu0 0.0
  %1872 = vmatpush2.msra.mxu0 0.0
  %1873 = vmatprep.subr.mxu0 0.0
  %1874 = vmatpush2.msra.mxu0 0.0
  %1875 = vmatprep.subr.mxu0 0.0
  %1876 = vmatpush2.msra.mxu0 0.0
  %1877 = vmatprep.subr.mxu0 0.0
  %1878 = vmatpush2.msra.mxu0 0.0
  %1879 = vmatprep.subr.mxu0 0.0
  %1880 = vmatpush2.msra.mxu0 0.0
  %1881 = vmatprep.subr.mxu0 0.0
  %1882 = vmatpush2.msra.mxu0 0.0
  %1883 = vmatprep.subr.mxu0 0.0
  %1884 = vmatpush2.msra.mxu0 0.0
  %1885 = vmatprep.subr.mxu0 0.0
  %1886 = vmatpush2.msra.mxu0 0.0
  %1887 = vmatprep.mubr.f32.mxu0 0.0
  %1888 = vmatmul.mubr.f32.gmra.mxu0 %v1799
  %v1889 = vpop.f32.mrf.mxu0
  %v1890 = vadd.f32 %v1821, %v1889
  %v1891 = vpop.f32.mrf.mxu0
  %1892 = vdwg.mxu0
  %vm1893 = vcmp.gt.f32.partialorder %v1890, 0.0
  %v1894 = vmul.f32 %v1890, 0.01
  %v1895 = vsel %vm1893, %v1890, %v1894
  %1896 = vst.msk [vmem:[#allocation4] sm:$0xff] %vm1025, 0.0
  %vm1897 = vcmask 124928
  %1898 = vst.msk [vmem:[#allocation4 + $0x8] sm:$0x7] %vm1897, 0.0
  %1899 = vst.msk [vmem:[#allocation4 + $0x40] sm:$0xff] %vm1025, 0.0
  %1900 = vst.msk [vmem:[#allocation4 + $0x48] sm:$0x7] %vm1897, 0.0
  %s1901 = scalar_lea.vmem [#allocation4], 48
  %1902 = vst.msk [vmem:[%s1901] sm:$0xff] %vm1025, 0.0
  %1903 = vst.msk [vmem:[%s1901 + $0x8] sm:$0x7] %vm1897, 0.0
  %1904 = vst.msk [vmem:[%s1901 + $0x40] sm:$0xff] %vm1025, 0.0
  %1905 = vst.msk [vmem:[%s1901 + $0x48] sm:$0x7] %vm1897, 0.0
  %vm1906 = vcmask 122880
  %1907 = vst.msk [vmem:[#allocation4 + $0x7] sm:$0x1] %vm1906, 0.0
  %1908 = vst.msk [vmem:[#allocation4 + $0x17] sm:$0x1] %vm1906, 0.0
  %1909 = vst.msk [vmem:[#allocation4 + $0x27] sm:$0x1] %vm1906, 0.0
  %1910 = vst.msk [vmem:[#allocation4 + $0x37] sm:$0x1] %vm1906, 0.0
  %1911 = vst.msk [vmem:[#allocation4 + $0x47] sm:$0x1] %vm1906, 0.0
  %1912 = vst.msk [vmem:[#allocation4 + $0x57] sm:$0x1] %vm1906, 0.0
  %1913 = vst.msk [vmem:[#allocation4 + $0x67] sm:$0x1] %vm1906, 0.0
  %1914 = vst.msk [vmem:[#allocation4 + $0x77] sm:$0x1] %vm1906, 0.0
  %1915 = vst.msk [vmem:[#allocation4 + $0xa] sm:$0x1] %vm1906, 0.0
  %1916 = vst.msk [vmem:[#allocation4 + $0x1a] sm:$0x1] %vm1906, 0.0
  %1917 = vst.msk [vmem:[#allocation4 + $0x2a] sm:$0x1] %vm1906, 0.0
  %1918 = vst.msk [vmem:[#allocation4 + $0x3a] sm:$0x1] %vm1906, 0.0
  %1919 = vst.msk [vmem:[#allocation4 + $0x4a] sm:$0x1] %vm1906, 0.0
  %1920 = vst.msk [vmem:[#allocation4 + $0x5a] sm:$0x1] %vm1906, 0.0
  %1921 = vst.msk [vmem:[#allocation4 + $0x6a] sm:$0x1] %vm1906, 0.0
  %1922 = vst.msk [vmem:[#allocation4 + $0x7a] sm:$0x1] %vm1906, 0.0
  %v1924 = vcombine.high %v1895, %v1895
  %v1926 = vunpack.c.l.s4 1983009808
  %v1927 = vunpack.c.0.s8 %v1926
  %v1928 = vlaneseq
  %v1929 = vshrl.u32 %v1928, 7
  %v1930 = vsub.s32 %v1927, %v1929
  %v1931 = vrot.slane %v1895, %v1930
  %v1933 = vunpack.c.l.s4 1983009808
  %v1934 = vunpack.c.0.s8 %v1933
  %v1935 = vlaneseq
  %v1936 = vshrl.u32 %v1935, 7
  %v1937 = vsub.s32 %v1934, %v1936
  %v1938 = vrot.slane %v1924, %v1937
  %v1939 = vcombine.high %v1931, %v1931
  %v1940 = vcombine.high %v1938, %v1938
  %s1945 = scalar_lea.vmem [#allocation4], 16
  %vm1946 = vcmask 123904
  %1947 = vst.msk [vmem:[%s1945 + $0x8] sm:$0x3] %vm1946, %v1931
  %1948 = vst.msk [vmem:[%s1945 + $0x18] sm:$0x3] %vm1946, %v1939
  %1949 = vst.msk [vmem:[%s1945 + $0x48] sm:$0x3] %vm1946, %v1938
  %1950 = vst.msk [vmem:[%s1945 + $0x58] sm:$0x3] %vm1946, %v1940
  %v1951 = vld [vmem:[#allocation4 + $0x7] sm:$0x3]
  %v1952 = vld [vmem:[#allocation4 + $0x17] sm:$0x3]
  %v1953 = vld [vmem:[#allocation4 + $0x47] sm:$0x3]
  %v1954 = vld [vmem:[#allocation4 + $0x57] sm:$0x3]
  %v1955 = vld [vmem:[#allocation4 + $0x8] sm:$0x3]
  %v1956 = vld [vmem:[#allocation4 + $0x18] sm:$0x3]
  %v1957 = vld [vmem:[#allocation4 + $0x48] sm:$0x3]
  %v1958 = vld [vmem:[#allocation4 + $0x58] sm:$0x3]
  %v1959 = vld [vmem:[#allocation4 + $0x9] sm:$0x3]
  %v1960 = vld [vmem:[#allocation4 + $0x19] sm:$0x3]
  %v1961 = vld [vmem:[#allocation4 + $0x49] sm:$0x3]
  %v1962 = vld [vmem:[#allocation4 + $0x59] sm:$0x3]
  %v1963 = vld [vmem:[%s1945 + $0x7] sm:$0x3]
  %v1964 = vld [vmem:[%s1945 + $0x17] sm:$0x3]
  %v1965 = vld [vmem:[%s1945 + $0x47] sm:$0x3]
  %v1966 = vld [vmem:[%s1945 + $0x57] sm:$0x3]
  %v1967 = vld [vmem:[%s1945 + $0x8] sm:$0x3]
  %v1968 = vld [vmem:[%s1945 + $0x18] sm:$0x3]
  %v1969 = vld [vmem:[%s1945 + $0x48] sm:$0x3]
  %v1970 = vld [vmem:[%s1945 + $0x58] sm:$0x3]
  %v1971 = vld [vmem:[%s1945 + $0x9] sm:$0x3]
  %v1972 = vld [vmem:[%s1945 + $0x19] sm:$0x3]
  %v1973 = vld [vmem:[%s1945 + $0x49] sm:$0x3]
  %v1974 = vld [vmem:[%s1945 + $0x59] sm:$0x3]
  %s1975 = scalar_lea.vmem [#allocation4], 32
  %v1976 = vld [vmem:[%s1975 + $0x7] sm:$0x3]
  %v1977 = vld [vmem:[%s1975 + $0x17] sm:$0x3]
  %v1978 = vld [vmem:[%s1975 + $0x47] sm:$0x3]
  %v1979 = vld [vmem:[%s1975 + $0x57] sm:$0x3]
  %v1980 = vld [vmem:[%s1975 + $0x8] sm:$0x3]
  %v1981 = vld [vmem:[%s1975 + $0x18] sm:$0x3]
  %v1982 = vld [vmem:[%s1975 + $0x48] sm:$0x3]
  %v1983 = vld [vmem:[%s1975 + $0x58] sm:$0x3]
  %v1984 = vld [vmem:[%s1975 + $0x9] sm:$0x3]
  %v1985 = vld [vmem:[%s1975 + $0x19] sm:$0x3]
  %v1986 = vld [vmem:[%s1975 + $0x49] sm:$0x3]
  %v1987 = vld [vmem:[%s1975 + $0x59] sm:$0x3]
  %v1992 = vcombine.low %v1951, %v1952
  %v1993 = vcombine.low %v1953, %v1954
  %v1995 = vunpack.c.l.s4 1983009808
  %v1996 = vunpack.c.0.s8 %v1995
  %v1997 = vlaneseq
  %v1998 = vshrl.u32 %v1997, 7
  %v1999 = vsub.s32 %v1996, %v1998
  %v2000 = vrot.slane %v1992, %v1999
  %v2002 = vunpack.c.l.s4 1983009808
  %v2003 = vunpack.c.0.s8 %v2002
  %v2004 = vlaneseq
  %v2005 = vshrl.u32 %v2004, 7
  %v2006 = vsub.s32 %v2003, %v2005
  %v2007 = vrot.slane %v1993, %v2006
  %v2008 = vcombine.low %v2000, %v2007
  %v2014 = vcombine.low %v1955, %v1956
  %v2015 = vcombine.low %v1957, %v1958
  %v2017 = vunpack.c.l.s4 1983009808
  %v2018 = vunpack.c.0.s8 %v2017
  %v2019 = vlaneseq
  %v2020 = vshrl.u32 %v2019, 7
  %v2021 = vsub.s32 %v2018, %v2020
  %v2022 = vrot.slane %v2014, %v2021
  %v2024 = vunpack.c.l.s4 1983009808
  %v2025 = vunpack.c.0.s8 %v2024
  %v2026 = vlaneseq
  %v2027 = vshrl.u32 %v2026, 7
  %v2028 = vsub.s32 %v2025, %v2027
  %v2029 = vrot.slane %v2015, %v2028
  %v2030 = vcombine.low %v2022, %v2029
  %2031 = vrot.lane.b32.xlu0 %v2030, 16
  %v2032 = vpop.permute.xlu0 %2031
  %v2038 = vcombine.low %v1959, %v1960
  %v2039 = vcombine.low %v1961, %v1962
  %v2041 = vunpack.c.l.s4 1983009808
  %v2042 = vunpack.c.0.s8 %v2041
  %v2043 = vlaneseq
  %v2044 = vshrl.u32 %v2043, 7
  %v2045 = vsub.s32 %v2042, %v2044
  %v2046 = vrot.slane %v2038, %v2045
  %v2048 = vunpack.c.l.s4 1983009808
  %v2049 = vunpack.c.0.s8 %v2048
  %v2050 = vlaneseq
  %v2051 = vshrl.u32 %v2050, 7
  %v2052 = vsub.s32 %v2049, %v2051
  %v2053 = vrot.slane %v2039, %v2052
  %v2054 = vcombine.low %v2046, %v2053
  %2055 = vrot.lane.b32.xlu0 %v2054, 32
  %v2056 = vpop.permute.xlu0 %2055
  %v2062 = vcombine.low %v1963, %v1964
  %v2063 = vcombine.low %v1965, %v1966
  %v2065 = vunpack.c.l.s4 1983009808
  %v2066 = vunpack.c.0.s8 %v2065
  %v2067 = vlaneseq
  %v2068 = vshrl.u32 %v2067, 7
  %v2069 = vsub.s32 %v2066, %v2068
  %v2070 = vrot.slane %v2062, %v2069
  %v2072 = vunpack.c.l.s4 1983009808
  %v2073 = vunpack.c.0.s8 %v2072
  %v2074 = vlaneseq
  %v2075 = vshrl.u32 %v2074, 7
  %v2076 = vsub.s32 %v2073, %v2075
  %v2077 = vrot.slane %v2063, %v2076
  %v2078 = vcombine.low %v2070, %v2077
  %2079 = vrot.lane.b32.xlu0 %v2078, 48
  %v2080 = vpop.permute.xlu0 %2079
  %v2086 = vcombine.low %v1967, %v1968
  %v2087 = vcombine.low %v1969, %v1970
  %v2089 = vunpack.c.l.s4 1983009808
  %v2090 = vunpack.c.0.s8 %v2089
  %v2091 = vlaneseq
  %v2092 = vshrl.u32 %v2091, 7
  %v2093 = vsub.s32 %v2090, %v2092
  %v2094 = vrot.slane %v2086, %v2093
  %v2096 = vunpack.c.l.s4 1983009808
  %v2097 = vunpack.c.0.s8 %v2096
  %v2098 = vlaneseq
  %v2099 = vshrl.u32 %v2098, 7
  %v2100 = vsub.s32 %v2097, %v2099
  %v2101 = vrot.slane %v2087, %v2100
  %v2102 = vcombine.low %v2094, %v2101
  %2103 = vrot.lane.b32.xlu0 %v2102, 64
  %v2104 = vpop.permute.xlu0 %2103
  %v2110 = vcombine.low %v1971, %v1972
  %v2111 = vcombine.low %v1973, %v1974
  %v2113 = vunpack.c.l.s4 1983009808
  %v2114 = vunpack.c.0.s8 %v2113
  %v2115 = vlaneseq
  %v2116 = vshrl.u32 %v2115, 7
  %v2117 = vsub.s32 %v2114, %v2116
  %v2118 = vrot.slane %v2110, %v2117
  %v2120 = vunpack.c.l.s4 1983009808
  %v2121 = vunpack.c.0.s8 %v2120
  %v2122 = vlaneseq
  %v2123 = vshrl.u32 %v2122, 7
  %v2124 = vsub.s32 %v2121, %v2123
  %v2125 = vrot.slane %v2111, %v2124
  %v2126 = vcombine.low %v2118, %v2125
  %2127 = vrot.lane.b32.xlu0 %v2126, 80
  %v2128 = vpop.permute.xlu0 %2127
  %v2134 = vcombine.low %v1976, %v1977
  %v2135 = vcombine.low %v1978, %v1979
  %v2137 = vunpack.c.l.s4 1983009808
  %v2138 = vunpack.c.0.s8 %v2137
  %v2139 = vlaneseq
  %v2140 = vshrl.u32 %v2139, 7
  %v2141 = vsub.s32 %v2138, %v2140
  %v2142 = vrot.slane %v2134, %v2141
  %v2144 = vunpack.c.l.s4 1983009808
  %v2145 = vunpack.c.0.s8 %v2144
  %v2146 = vlaneseq
  %v2147 = vshrl.u32 %v2146, 7
  %v2148 = vsub.s32 %v2145, %v2147
  %v2149 = vrot.slane %v2135, %v2148
  %v2150 = vcombine.low %v2142, %v2149
  %2151 = vrot.lane.b32.xlu0 %v2150, 96
  %v2152 = vpop.permute.xlu0 %2151
  %v2158 = vcombine.low %v1980, %v1981
  %v2159 = vcombine.low %v1982, %v1983
  %v2161 = vunpack.c.l.s4 1983009808
  %v2162 = vunpack.c.0.s8 %v2161
  %v2163 = vlaneseq
  %v2164 = vshrl.u32 %v2163, 7
  %v2165 = vsub.s32 %v2162, %v2164
  %v2166 = vrot.slane %v2158, %v2165
  %v2168 = vunpack.c.l.s4 1983009808
  %v2169 = vunpack.c.0.s8 %v2168
  %v2170 = vlaneseq
  %v2171 = vshrl.u32 %v2170, 7
  %v2172 = vsub.s32 %v2169, %v2171
  %v2173 = vrot.slane %v2159, %v2172
  %v2174 = vcombine.low %v2166, %v2173
  %2175 = vrot.lane.b32.xlu0 %v2174, 112
  %v2176 = vpop.permute.xlu0 %2175
  %v2182 = vcombine.low %v1984, %v1985
  %v2183 = vcombine.low %v1986, %v1987
  %v2185 = vunpack.c.l.s4 1983009808
  %v2186 = vunpack.c.0.s8 %v2185
  %v2187 = vlaneseq
  %v2188 = vshrl.u32 %v2187, 7
  %v2189 = vsub.s32 %v2186, %v2188
  %v2190 = vrot.slane %v2182, %v2189
  %v2192 = vunpack.c.l.s4 1983009808
  %v2193 = vunpack.c.0.s8 %v2192
  %v2194 = vlaneseq
  %v2195 = vshrl.u32 %v2194, 7
  %v2196 = vsub.s32 %v2193, %v2195
  %v2197 = vrot.slane %v2183, %v2196
  %v2198 = vcombine.low %v2190, %v2197
  %v2200 = vsel %vm1025, %v2008, %v2032
  %v2201 = vsel %vm1045, %v2200, %v2056
  %v2202 = vsel %vm63, %v2201, %v2080
  %v2203 = vsel %vm1099, %v2202, %v2104
  %v2204 = vsel %vm1788, %v2203, %v2128
  %v2205 = vsel %vm1792, %v2204, %v2152
  %v2206 = vsel %vm1796, %v2205, %v2176
  %v2207 = vld [vmem:[%s7] sm:$0x3]
  %v2209 = vlaneseq
  %v2210 = vshrl.u32 %v2209, 7
  %v2211 = vsub.s32 0, %v2210
  %v2212 = vrot.slane %v2207, %v2211
  %v2213 = vlaneseq
  %v2214 = vshrl.u32 %v2213, 7
  %v2215 = vsub.s32 1, %v2214
  %v2216 = vrot.slane %v2207, %v2215
  %v2219 = vmul.f32 %v2206, %v2212
  %v2220 = vmul.f32 %v2198, %v2216
  %v2221 = vsel %vm1025, %v2220, 0.0
  %v2222 = vadd.f32 %v2219, %v2221
  %2223 = vadd.xlane.f32.xlu0 %v2222
  %v2224 = vpop.xlane.xlu0 %2223
  %v2226 = vlaneseq
  %v2227 = vand.u32 %v2226, 127
  %v2228 = vlaneseq
  %v2229 = vshrl.u32 %v2228, 7
  %v2230 = vsub.s32 %v2227, %v2229
  %v2231 = vrot.slane %v2224, %v2230
  %2233 = vst.msk [vmem:[%s9] sm:$0x1] %vm1219, %v2231
  // Predicated region
  $region38: #{_lambda_.1} parent=0 // pred_check
    _
  $region39: #{_lambda_.1} parent=0 // pred_check_branch
    %2235 = sbr.rel (0) target = $region41
  $region40: #{_lambda_.1} parent=0 // pred_region
    _
  $region41: #{_lambda_.1} parent=0 // pred_fallthru
    _
  // Predicated region
  $region42: #{_lambda_.1} parent=0 // pred_check
    _
  $region43: #{_lambda_.1} parent=0 // pred_check_branch
    %2237 = sbr.rel (0) target = $region45
  $region44: #{_lambda_.1} parent=0 // pred_region
    _
  $region45: #{_lambda_.1} parent=0 // pred_fallthru
    _

</llo_original>
